<compile_context>
chip_gen: v6e
topology: v6e:2x2x1
jax: 0.10.0
libtpu: 0.0.40
codegen_flags: <defaults>
</compile_context>

<pallas_src>
import jax
import jax.numpy as jnp
import numpy as np
from jax import lax
from jax.experimental import pallas as pl
from jax.experimental.pallas import tpu as pltpu


EMBEDDING_DIM = 32
HIDDEN_LAYERS = [64, 32, 16, 8]

# Above this combined (user+item) padded vocabulary, the in-kernel one-hot gather is
# replaced by an XLA-side row gather of the fused layer-1 table.
_ONEHOT_VOCAB_LIMIT = 1024


def _round_up(x, m):
    return ((x + m - 1) // m) * m


def _cdiv(a, b):
    return -(-a // b)


def _vmem_budget_bytes():
    """~70% of per-core VMEM: ~45 MiB on v7x (64 MiB part), ~90 MiB on v5e/v6e."""
    cap = 64 * 1024 * 1024  # conservative default = v7x per-TensorCore VMEM
    try:
        info = pltpu.get_tpu_info()
        cap = int(getattr(info, "vmem_capacity_bytes", cap))
    except Exception:
        pass
    return int(cap * 0.7)


# --------------------------------------------------------------------------------------
# Kernels
# --------------------------------------------------------------------------------------
def _mlp_tail(h, layer_refs):
    """Hidden layers 2..4 + output layer on a feature-major (H, TB) activation.

    Weights are (out, in) bf16, biases (out, 1) f32; accumulation in f32.
    Returns (1, TB) f32 logits.
    """
    (w2, b2), (w3, b3), (w4, b4), (wo, bo) = layer_refs
    for w_ref, b_ref in ((w2, b2), (w3, b3), (w4, b4)):
        h = jnp.maximum(
            jnp.dot(w_ref[...], h.astype(jnp.bfloat16),
                    preferred_element_type=jnp.float32) + b_ref[...], 0.0)
    return jnp.dot(wo[...], h.astype(jnp.bfloat16),
                   preferred_element_type=jnp.float32) + bo[...]


def ncf_onehot_kernel(uidx_ref, iidx_ref, t1_ref, b1_ref,
                      w2_ref, b2_ref, w3_ref, b3_ref, w4_ref, b4_ref,
                      wo_ref, bo_ref, out_ref):
    """Small-vocab path: embedding lookup + MLP layer 1 fused into one one-hot matmul.

    uidx/iidx: (1, TB) int32 (item indices already offset by the user block width).
    t1:        (H1, Vpad) bf16 fused table [W1_user @ U^T | W1_item @ I^T | 0-pad].
    out:       (1, TB) f32 sigmoid scores (lane-dense store).
    """
    uidx = uidx_ref[...]                                    # (1, TB)
    iidx = iidx_ref[...]                                    # (1, TB)
    vpad = t1_ref.shape[1]
    tb = uidx.shape[-1]

    rows = lax.broadcasted_iota(jnp.int32, (vpad, tb), 0)
    # Combined one-hot: a 1 at the user row AND a 1 at the (offset) item row, so a
    # single (H1, Vpad) @ (Vpad, TB) matmul yields both layer-1 contributions at once.
    oh = jnp.logical_or(rows == uidx, rows == iidx).astype(jnp.bfloat16)

    h = jnp.dot(t1_ref[...], oh, preferred_element_type=jnp.float32)    # (H1, TB)
    h = jnp.maximum(h + b1_ref[...], 0.0)

    logits = _mlp_tail(h, ((w2_ref, b2_ref), (w3_ref, b3_ref),
                           (w4_ref, b4_ref), (wo_ref, bo_ref)))
    out_ref[...] = jax.nn.sigmoid(logits)


def ncf_pregathered_kernel(x1_ref, b1_ref,
                           w2_ref, b2_ref, w3_ref, b3_ref, w4_ref, b4_ref,
                           wo_ref, bo_ref, out_ref):
    """Large-vocab path: layer-1 pre-activations gathered outside the kernel.

    x1: (H1, TB) f32 fused layer-1 pre-activation (user + item contributions).
    """
    h = jnp.maximum(x1_ref[...] + b1_ref[...], 0.0)
    logits = _mlp_tail(h, ((w2_ref, b2_ref), (w3_ref, b3_ref),
                           (w4_ref, b4_ref), (wo_ref, bo_ref)))
    out_ref[...] = jax.nn.sigmoid(logits)


# --------------------------------------------------------------------------------------
# Parameters
# --------------------------------------------------------------------------------------
def init_params(key, num_users, num_items,
                embedding_dim=EMBEDDING_DIM, hidden_layers=HIDDEN_LAYERS):
    """Torch-shaped params: embeddings ~N(0,1), Linear (out,in) uniform(+-1/sqrt(fan_in))."""
    n_lin = len(hidden_layers) + 1
    keys = jax.random.split(key, 2 + 2 * n_lin)
    it = iter(keys)
    params = {
        "user_table": jax.random.normal(next(it), (num_users, embedding_dim), jnp.float32),
        "item_table": jax.random.normal(next(it), (num_items, embedding_dim), jnp.float32),
    }
    sizes = [embedding_dim * 2] + list(hidden_layers) + [1]
    weights, biases = [], []
    for fan_in, fan_out in zip(sizes[:-1], sizes[1:]):
        bound = 1.0 / np.sqrt(fan_in)
        weights.append(jax.random.uniform(next(it), (fan_out, fan_in), jnp.float32,
                                          minval=-bound, maxval=bound))   # torch (out, in)
        biases.append(jax.random.uniform(next(it), (fan_out,), jnp.float32,
                                         minval=-bound, maxval=bound))
    params["weights"] = weights
    params["biases"] = biases
    return params


def prepare_params(params, embedding_dim=EMBEDDING_DIM):
    """One-time prep: fold MLP layer 1 into the embedding tables, concatenate the
    user|item blocks (single layer-1 matmul), pad, and cast resident weights to bf16."""
    D = embedding_dim
    ws, bs = params["weights"], params["biases"]
    assert len(ws) == 5, "kernel is specialized to hidden_layers=[64, 32, 16, 8]"
    w1 = ws[0]                                              # (H1, 2D)

    num_users = params["user_table"].shape[0]
    upad = _round_up(num_users, 8)                          # item block offset

    # fused_u[h, u] = sum_d W1[h, d]   * user_table[u, d]
    # fused_i[h, i] = sum_d W1[h, D+d] * item_table[i, d]
    fused_u = w1[:, :D] @ params["user_table"].T            # (H1, num_users) f32
    fused_i = w1[:, D:] @ params["item_table"].T            # (H1, num_items) f32
    fused_u = jnp.pad(fused_u, ((0, 0), (0, upad - num_users)))
    fused = jnp.concatenate([fused_u, fused_i], axis=1)     # (H1, upad + num_items)
    vpad = _round_up(fused.shape[1], 16)
    fused = jnp.pad(fused, ((0, 0), (0, vpad - fused.shape[1])))

    kp = {
        "t1": fused.astype(jnp.bfloat16),                   # (H1, Vpad)  one-hot path
        "t1_rows": fused.T.astype(jnp.bfloat16),            # (Vpad, H1)  gather path
        "item_offset": jnp.asarray(upad, dtype=jnp.int32),
        "b1": bs[0].reshape(-1, 1).astype(jnp.float32),
    }
    for name, w, b in zip(["2", "3", "4", "o"], ws[1:], bs[1:]):
        kp["w" + name] = w.astype(jnp.bfloat16)              # (out, in) bf16
        kp["b" + name] = b.reshape(-1, 1).astype(jnp.float32)  # (out, 1) f32
    return kp


# --------------------------------------------------------------------------------------
# Forward wrapper
# --------------------------------------------------------------------------------------
def make_ncf_forward(use_onehot=None, single_buffer_weights=True):
    """Builds a jitted Pallas NCF forward.

    use_onehot: True/False to force the gather strategy, None = pick from vocab size.
    single_buffer_weights: single-buffer the VMEM-resident weights (constant index_map,
    so double-buffering them is pure wasted VMEM).
    """

    @jax.jit
    def ncf_forward(user_indices, item_indices, kparams):
        B = user_indices.shape[0]
        h1, vpad = kparams["t1"].shape
        onehot = use_onehot if use_onehot is not None else (vpad <= _ONEHOT_VOCAB_LIMIT)

        if onehot:
            weights = (kparams["t1"], kparams["b1"],
                       kparams["w2"], kparams["b2"], kparams["w3"], kparams["b3"],
                       kparams["w4"], kparams["b4"], kparams["wo"], kparams["bo"])
        else:
            weights = (kparams["b1"],
                       kparams["w2"], kparams["b2"], kparams["w3"], kparams["b3"],
                       kparams["w4"], kparams["b4"], kparams["wo"], kparams["bo"])

        # --- batch tile: large (amortize ~0.35us/step overhead), but keep >= 2 grid
        # steps when the batch allows (v7x megacore) and respect the VMEM budget.
        budget = _vmem_budget_bytes()
        weight_bytes = sum(int(w.size) * w.dtype.itemsize for w in weights)
        avail = max(budget - 2 * weight_bytes, 2 * 1024 * 1024)

        tb = min(4096, _round_up(max(B, 1), 128))
        if B > 256 and _cdiv(B, tb) < 2:
            tb = _round_up(_cdiv(B, 2), 128)

        def _tile_bytes(t):
            if onehot:
                work = vpad * t * 6            # int32 iota/compare + bf16 one-hot temps
                io = 2 * 2 * t * 4             # two int32 index tiles, double-buffered
            else:
                work = 0
                io = 2 * h1 * t * 4            # (H1, TB) f32 input tile, double-buffered
            act = 2 * h1 * t * 4               # f32 activations
            return work + io + act + 2 * t * 4   # + double-buffered output tile

        while tb > 128 and _tile_bytes(tb) > avail:
            tb -= 128
        g = _cdiv(B, tb)
        bpad = g * tb

        # --- BlockSpecs ----------------------------------------------------------
        tile_spec = pl.BlockSpec((1, tb), lambda i: (0, i))

        def resident_spec(shape):
            if single_buffer_weights:
                return pl.BlockSpec(shape, lambda i: (0, 0),
                                    pipeline_mode=pl.Buffered(buffer_count=1))
            return pl.BlockSpec(shape, lambda i: (0, 0))

        resident_specs = [resident_spec(tuple(w.shape)) for w in weights]
        cparams = pltpu.CompilerParams(dimension_semantics=("parallel",),
                                       vmem_limit_bytes=budget)

        if onehot:
            def _prep_idx(idx):
                idx = idx.reshape(-1).astype(jnp.int32)
                if bpad != B:
                    idx = jnp.pad(idx, (0, bpad - B))   # padded rows hit row 0; sliced off
                return idx.reshape(1, bpad)

            uidx = _prep_idx(user_indices)
            iidx = _prep_idx(item_indices.astype(jnp.int32) + kparams["item_offset"])
            out = pl.pallas_call(
                ncf_onehot_kernel,
                out_shape=jax.ShapeDtypeStruct((1, bpad), jnp.float32),
                grid=(g,),
                in_specs=[tile_spec, tile_spec] + resident_specs,
                out_specs=tile_spec,
                compiler_params=cparams,
            )(uidx, iidx, *weights)
        else:
            # Large-vocab path: gather the fused layer-1 rows outside the kernel (XLA
            # dynamic-gather) -- avoids the O(vocab x TB) one-hot entirely.
            # TODO(synk): move this gather in-kernel (scalar-prefetch / manual-DMA row
            # gather with the table in HBM via memory_space=pl.ANY) to skip the HBM
            # round-trip of the gathered activations.
            u_rows = jnp.take(kparams["t1_rows"], user_indices.astype(jnp.int32), axis=0)
            i_rows = jnp.take(kparams["t1_rows"],
                              item_indices.astype(jnp.int32) + kparams["item_offset"],
                              axis=0)
            x1 = (u_rows.astype(jnp.float32) + i_rows.astype(jnp.float32)).T   # (H1, B)
            if bpad != B:
                x1 = jnp.pad(x1, ((0, 0), (0, bpad - B)))
            x1_spec = pl.BlockSpec((h1, tb), lambda i: (0, i))
            out = pl.pallas_call(
                ncf_pregathered_kernel,
                out_shape=jax.ShapeDtypeStruct((1, bpad), jnp.float32),
                grid=(g,),
                in_specs=[x1_spec] + resident_specs,
                out_specs=tile_spec,
                compiler_params=cparams,
            )(x1, *weights)

        return out.reshape(-1)[:B]

    return ncf_forward


# --------------------------------------------------------------------------------------
# Pure-JAX reference (original torch math, f32)
# --------------------------------------------------------------------------------------
def ncf_reference(user_indices, item_indices, params):
    u = params["user_table"][user_indices]
    i = params["item_table"][item_indices]
    x = jnp.concatenate([u, i], axis=-1)
    for w, b in zip(params["weights"][:-1], params["biases"][:-1]):
        x = jnp.maximum(x @ w.T + b, 0.0)
    x = x @ params["weights"][-1].T + params["biases"][-1]
    return jax.nn.sigmoid(x)[:, 0]


if __name__ == "__main__":
    num_users, num_items, batch = 50, 40, 8
    key = jax.random.PRNGKey(0)
    kp_key, ku, kib = jax.random.split(key, 3)

    params = init_params(kp_key, num_users, num_items)
    kernel_params = prepare_params(params)

    user_indices = jax.random.randint(ku, (batch,), 0, num_users, dtype=jnp.int32)
    item_indices = jax.random.randint(kib, (batch,), 0, num_items, dtype=jnp.int32)

    ref = ncf_reference(user_indices, item_indices, params)

    def run(use_onehot):
        try:
            fwd = make_ncf_forward(use_onehot=use_onehot, single_buffer_weights=True)
            return jax.block_until_ready(fwd(user_indices, item_indices, kernel_params))
        except Exception:
            # Safety net in case this JAX build rejects pipeline_mode=pl.Buffered(1).
            fwd = make_ncf_forward(use_onehot=use_onehot, single_buffer_weights=False)
            return jax.block_until_ready(fwd(user_indices, item_indices, kernel_params))

    # In-kernel fused one-hot path (the default at this vocab size).
    out = run(use_onehot=True)
    assert out.shape == (batch,)
    # bf16 weights/fused table in the kernel vs f32 reference -> loose-ish tolerance.
    np.testing.assert_allclose(np.asarray(out), np.asarray(ref), rtol=2e-2, atol=2e-2)

    # Large-vocab (pre-gathered fused rows) path, forced here to validate it as well.
    out_g = run(use_onehot=False)
    np.testing.assert_allclose(np.asarray(out_g), np.asarray(ref), rtol=2e-2, atol=2e-2)

    print("KERNEL_OK")
</pallas_src>

<mosaic_0001>
module attributes {stable_mosaic.version = 11 : i64} {
  func.func @ncf_onehot_kernel(%arg0: i32, %arg1: memref<1x128xi32, #tpu.memory_space<vmem>>, %arg2: memref<1x128xi32, #tpu.memory_space<vmem>>, %arg3: memref<64x96xbf16, #tpu.memory_space<vmem>>, %arg4: memref<64x1xf32, #tpu.memory_space<vmem>>, %arg5: memref<32x64xbf16, #tpu.memory_space<vmem>>, %arg6: memref<32x1xf32, #tpu.memory_space<vmem>>, %arg7: memref<16x32xbf16, #tpu.memory_space<vmem>>, %arg8: memref<16x1xf32, #tpu.memory_space<vmem>>, %arg9: memref<8x16xbf16, #tpu.memory_space<vmem>>, %arg10: memref<8x1xf32, #tpu.memory_space<vmem>>, %arg11: memref<1x8xbf16, #tpu.memory_space<vmem>>, %arg12: memref<1x1xf32, #tpu.memory_space<vmem>>, %arg13: memref<1x128xf32, #tpu.memory_space<vmem>>) attributes {dimension_semantics = [#tpu.dimension_semantics<parallel>], iteration_bounds = array<i64: 1>, scalar_prefetch = 0 : i64, scratch_operands = 0 : i64, tpu.core_type = #tpu.core_type<tc>, window_params = [{transform_indices = @transform_0, window_bounds = array<i64: 1, 128>}, {transform_indices = @transform_1, window_bounds = array<i64: 1, 128>}, {pipeline_mode = #tpu.pipeline_mode<synchronous>, transform_indices = @transform_2, window_bounds = array<i64: 64, 96>}, {pipeline_mode = #tpu.pipeline_mode<synchronous>, transform_indices = @transform_3, window_bounds = array<i64: 64, 1>}, {pipeline_mode = #tpu.pipeline_mode<synchronous>, transform_indices = @transform_4, window_bounds = array<i64: 32, 64>}, {pipeline_mode = #tpu.pipeline_mode<synchronous>, transform_indices = @transform_5, window_bounds = array<i64: 32, 1>}, {pipeline_mode = #tpu.pipeline_mode<synchronous>, transform_indices = @transform_6, window_bounds = array<i64: 16, 32>}, {pipeline_mode = #tpu.pipeline_mode<synchronous>, transform_indices = @transform_7, window_bounds = array<i64: 16, 1>}, {pipeline_mode = #tpu.pipeline_mode<synchronous>, transform_indices = @transform_8, window_bounds = array<i64: 8, 16>}, {pipeline_mode = #tpu.pipeline_mode<synchronous>, transform_indices = @transform_9, window_bounds = array<i64: 8, 1>}, {pipeline_mode = #tpu.pipeline_mode<synchronous>, transform_indices = @transform_10, window_bounds = array<i64: 1, 8>}, {pipeline_mode = #tpu.pipeline_mode<synchronous>, transform_indices = @transform_11, window_bounds = array<i64: 1, 1>}, {transform_indices = @transform_12, window_bounds = array<i64: 1, 128>}]} {
    %c0 = arith.constant 0 : index
    %c0_0 = arith.constant 0 : index
    %0 = vector.load %arg1[%c0, %c0_0] : memref<1x128xi32, #tpu.memory_space<vmem>>, vector<1x128xi32>
    %c0_1 = arith.constant 0 : index
    %c0_2 = arith.constant 0 : index
    %1 = vector.load %arg2[%c0_1, %c0_2] : memref<1x128xi32, #tpu.memory_space<vmem>>, vector<1x128xi32>
    %2 = tpu.iota {dimensions = array<i32: 0>} : vector<96x128xi32>
    %3 = vector.broadcast %0 : vector<1x128xi32> to vector<96x128xi32>
    %4 = arith.cmpi eq, %2, %3 : vector<96x128xi32>
    %5 = vector.broadcast %1 : vector<1x128xi32> to vector<96x128xi32>
    %6 = arith.cmpi eq, %2, %5 : vector<96x128xi32>
    %7 = arith.ori %4, %6 : vector<96x128xi1>
    %8 = arith.extui %7 : vector<96x128xi1> to vector<96x128xi32>
    %9 = arith.sitofp %8 : vector<96x128xi32> to vector<96x128xf32>
    %10 = arith.truncf %9 : vector<96x128xf32> to vector<96x128xbf16>
    %c0_3 = arith.constant 0 : index
    %c0_4 = arith.constant 0 : index
    %11 = vector.load %arg3[%c0_3, %c0_4] : memref<64x96xbf16, #tpu.memory_space<vmem>>, vector<64x96xbf16>
    %cst = arith.constant dense<0.000000e+00> : vector<64x128xf32>
    %12 = tpu.matmul %11, %10, %cst {dimension_numbers = #tpu.dot_dimension_numbers<[1], [0], [0], [1], [0, 0, 1, 1], [], []>} : vector<64x96xbf16>, vector<96x128xbf16>, vector<64x128xf32> -> vector<64x128xf32>
    %c0_5 = arith.constant 0 : index
    %c0_6 = arith.constant 0 : index
    %13 = vector.load %arg4[%c0_5, %c0_6] : memref<64x1xf32, #tpu.memory_space<vmem>>, vector<64x1xf32>
    %14 = vector.broadcast %13 : vector<64x1xf32> to vector<64x128xf32>
    %15 = arith.addf %12, %14 : vector<64x128xf32>
    %cst_7 = arith.constant 0.000000e+00 : f32
    %16 = vector.broadcast %cst_7 : f32 to vector<64x128xf32>
    %17 = arith.maximumf %15, %16 : vector<64x128xf32>
    %c0_8 = arith.constant 0 : index
    %c0_9 = arith.constant 0 : index
    %18 = vector.load %arg5[%c0_8, %c0_9] : memref<32x64xbf16, #tpu.memory_space<vmem>>, vector<32x64xbf16>
    %19 = arith.truncf %17 : vector<64x128xf32> to vector<64x128xbf16>
    %cst_10 = arith.constant dense<0.000000e+00> : vector<32x128xf32>
    %20 = tpu.matmul %18, %19, %cst_10 {dimension_numbers = #tpu.dot_dimension_numbers<[1], [0], [0], [1], [0, 0, 1, 1], [], []>} : vector<32x64xbf16>, vector<64x128xbf16>, vector<32x128xf32> -> vector<32x128xf32>
    %c0_11 = arith.constant 0 : index
    %c0_12 = arith.constant 0 : index
    %21 = vector.load %arg6[%c0_11, %c0_12] : memref<32x1xf32, #tpu.memory_space<vmem>>, vector<32x1xf32>
    %22 = vector.broadcast %21 : vector<32x1xf32> to vector<32x128xf32>
    %23 = arith.addf %20, %22 : vector<32x128xf32>
    %cst_13 = arith.constant 0.000000e+00 : f32
    %24 = vector.broadcast %cst_13 : f32 to vector<32x128xf32>
    %25 = arith.maximumf %23, %24 : vector<32x128xf32>
    %c0_14 = arith.constant 0 : index
    %c0_15 = arith.constant 0 : index
    %26 = vector.load %arg7[%c0_14, %c0_15] : memref<16x32xbf16, #tpu.memory_space<vmem>>, vector<16x32xbf16>
    %27 = arith.truncf %25 : vector<32x128xf32> to vector<32x128xbf16>
    %cst_16 = arith.constant dense<0.000000e+00> : vector<16x128xf32>
    %28 = tpu.matmul %26, %27, %cst_16 {dimension_numbers = #tpu.dot_dimension_numbers<[1], [0], [0], [1], [0, 0, 1, 1], [], []>} : vector<16x32xbf16>, vector<32x128xbf16>, vector<16x128xf32> -> vector<16x128xf32>
    %c0_17 = arith.constant 0 : index
    %c0_18 = arith.constant 0 : index
    %29 = vector.load %arg8[%c0_17, %c0_18] : memref<16x1xf32, #tpu.memory_space<vmem>>, vector<16x1xf32>
    %30 = vector.broadcast %29 : vector<16x1xf32> to vector<16x128xf32>
    %31 = arith.addf %28, %30 : vector<16x128xf32>
    %cst_19 = arith.constant 0.000000e+00 : f32
    %32 = vector.broadcast %cst_19 : f32 to vector<16x128xf32>
    %33 = arith.maximumf %31, %32 : vector<16x128xf32>
    %c0_20 = arith.constant 0 : index
    %c0_21 = arith.constant 0 : index
    %34 = vector.load %arg9[%c0_20, %c0_21] : memref<8x16xbf16, #tpu.memory_space<vmem>>, vector<8x16xbf16>
    %35 = arith.truncf %33 : vector<16x128xf32> to vector<16x128xbf16>
    %cst_22 = arith.constant dense<0.000000e+00> : vector<8x128xf32>
    %36 = tpu.matmul %34, %35, %cst_22 {dimension_numbers = #tpu.dot_dimension_numbers<[1], [0], [0], [1], [0, 0, 1, 1], [], []>} : vector<8x16xbf16>, vector<16x128xbf16>, vector<8x128xf32> -> vector<8x128xf32>
    %c0_23 = arith.constant 0 : index
    %c0_24 = arith.constant 0 : index
    %37 = vector.load %arg10[%c0_23, %c0_24] : memref<8x1xf32, #tpu.memory_space<vmem>>, vector<8x1xf32>
    %38 = vector.broadcast %37 : vector<8x1xf32> to vector<8x128xf32>
    %39 = arith.addf %36, %38 : vector<8x128xf32>
    %cst_25 = arith.constant 0.000000e+00 : f32
    %40 = vector.broadcast %cst_25 : f32 to vector<8x128xf32>
    %41 = arith.maximumf %39, %40 : vector<8x128xf32>
    %c0_26 = arith.constant 0 : index
    %c0_27 = arith.constant 0 : index
    %42 = vector.load %arg11[%c0_26, %c0_27] : memref<1x8xbf16, #tpu.memory_space<vmem>>, vector<1x8xbf16>
    %43 = arith.truncf %41 : vector<8x128xf32> to vector<8x128xbf16>
    %cst_28 = arith.constant dense<0.000000e+00> : vector<1x128xf32>
    %44 = tpu.matmul %42, %43, %cst_28 {dimension_numbers = #tpu.dot_dimension_numbers<[1], [0], [0], [1], [0, 0, 1, 1], [], []>} : vector<1x8xbf16>, vector<8x128xbf16>, vector<1x128xf32> -> vector<1x128xf32>
    %c0_29 = arith.constant 0 : index
    %c0_30 = arith.constant 0 : index
    %45 = vector.load %arg12[%c0_29, %c0_30] : memref<1x1xf32, #tpu.memory_space<vmem>>, vector<1x1xf32>
    %46 = vector.broadcast %45 : vector<1x1xf32> to vector<1x128xf32>
    %47 = arith.addf %44, %46 : vector<1x128xf32>
    %48 = arith.negf %47 : vector<1x128xf32>
    %49 = math.exp %48 : vector<1x128xf32>
    %cst_31 = arith.constant 1.000000e+00 : f32
    %50 = vector.broadcast %cst_31 : f32 to vector<1x128xf32>
    %51 = arith.addf %50, %49 : vector<1x128xf32>
    %52 = arith.divf %50, %51 : vector<1x128xf32>
    %c0_32 = arith.constant 0 : index
    %c0_33 = arith.constant 0 : index
    %53 = vector.load %arg13[%c0_32, %c0_33] : memref<1x128xf32, #tpu.memory_space<vmem>>, vector<1x128xf32>
    tpu.vector_store %arg13[%c0_32, %c0_33], %52 {strides = array<i32>} : memref<1x128xf32, #tpu.memory_space<vmem>>, vector<1x128xf32>,
    return
  }
  func.func @transform_0(%arg0: i32) -> (i32, i32) {
    %c0_i32 = arith.constant 0 : i32
    %c0_i32_0 = arith.constant 0 : i32
    return %c0_i32, %arg0 : i32, i32
  }
  func.func @transform_1(%arg0: i32) -> (i32, i32) {
    %c0_i32 = arith.constant 0 : i32
    %c0_i32_0 = arith.constant 0 : i32
    return %c0_i32, %arg0 : i32, i32
  }
  func.func @transform_2(%arg0: i32) -> (i32, i32) {
    %c0_i32 = arith.constant 0 : i32
    %c0_i32_0 = arith.constant 0 : i32
    %c0_i32_1 = arith.constant 0 : i32
    return %c0_i32, %c0_i32_0 : i32, i32
  }
  func.func @transform_3(%arg0: i32) -> (i32, i32) {
    %c0_i32 = arith.constant 0 : i32
    %c0_i32_0 = arith.constant 0 : i32
    %c0_i32_1 = arith.constant 0 : i32
    return %c0_i32, %c0_i32_0 : i32, i32
  }
  func.func @transform_4(%arg0: i32) -> (i32, i32) {
    %c0_i32 = arith.constant 0 : i32
    %c0_i32_0 = arith.constant 0 : i32
    %c0_i32_1 = arith.constant 0 : i32
    return %c0_i32, %c0_i32_0 : i32, i32
  }
  func.func @transform_5(%arg0: i32) -> (i32, i32) {
    %c0_i32 = arith.constant 0 : i32
    %c0_i32_0 = arith.constant 0 : i32
    %c0_i32_1 = arith.constant 0 : i32
    return %c0_i32, %c0_i32_0 : i32, i32
  }
  func.func @transform_6(%arg0: i32) -> (i32, i32) {
    %c0_i32 = arith.constant 0 : i32
    %c0_i32_0 = arith.constant 0 : i32
    %c0_i32_1 = arith.constant 0 : i32
    return %c0_i32, %c0_i32_0 : i32, i32
  }
  func.func @transform_7(%arg0: i32) -> (i32, i32) {
    %c0_i32 = arith.constant 0 : i32
    %c0_i32_0 = arith.constant 0 : i32
    %c0_i32_1 = arith.constant 0 : i32
    return %c0_i32, %c0_i32_0 : i32, i32
  }
  func.func @transform_8(%arg0: i32) -> (i32, i32) {
    %c0_i32 = arith.constant 0 : i32
    %c0_i32_0 = arith.constant 0 : i32
    %c0_i32_1 = arith.constant 0 : i32
    return %c0_i32, %c0_i32_0 : i32, i32
  }
  func.func @transform_9(%arg0: i32) -> (i32, i32) {
    %c0_i32 = arith.constant 0 : i32
    %c0_i32_0 = arith.constant 0 : i32
    %c0_i32_1 = arith.constant 0 : i32
    return %c0_i32, %c0_i32_0 : i32, i32
  }
  func.func @transform_10(%arg0: i32) -> (i32, i32) {
    %c0_i32 = arith.constant 0 : i32
    %c0_i32_0 = arith.constant 0 : i32
    %c0_i32_1 = arith.constant 0 : i32
    return %c0_i32, %c0_i32_0 : i32, i32
  }
  func.func @transform_11(%arg0: i32) -> (i32, i32) {
    %c0_i32 = arith.constant 0 : i32
    %c0_i32_0 = arith.constant 0 : i32
    %c0_i32_1 = arith.constant 0 : i32
    return %c0_i32, %c0_i32_0 : i32, i32
  }
  func.func @transform_12(%arg0: i32) -> (i32, i32) {
    %c0_i32 = arith.constant 0 : i32
    %c0_i32_0 = arith.constant 0 : i32
    return %c0_i32, %arg0 : i32, i32
  }
}

module attributes {stable_mosaic.version = 11 : i64} {
  func.func @ncf_onehot_kernel(%arg0: i32, %arg1: memref<1x128xi32, #tpu.memory_space<vmem>>, %arg2: memref<1x128xi32, #tpu.memory_space<vmem>>, %arg3: memref<64x96xbf16, #tpu.memory_space<vmem>>, %arg4: memref<64x1xf32, #tpu.memory_space<vmem>>, %arg5: memref<32x64xbf16, #tpu.memory_space<vmem>>, %arg6: memref<32x1xf32, #tpu.memory_space<vmem>>, %arg7: memref<16x32xbf16, #tpu.memory_space<vmem>>, %arg8: memref<16x1xf32, #tpu.memory_space<vmem>>, %arg9: memref<8x16xbf16, #tpu.memory_space<vmem>>, %arg10: memref<8x1xf32, #tpu.memory_space<vmem>>, %arg11: memref<1x8xbf16, #tpu.memory_space<vmem>>, %arg12: memref<1x1xf32, #tpu.memory_space<vmem>>, %arg13: memref<1x128xf32, #tpu.memory_space<vmem>>) attributes {dimension_semantics = [#tpu.dimension_semantics<parallel>], iteration_bounds = array<i64: 1>, scalar_prefetch = 0 : i64, scratch_operands = 0 : i64, tpu.core_type = #tpu.core_type<tc>, window_params = [{transform_indices = @transform_0, window_bounds = array<i64: 1, 128>}, {transform_indices = @transform_1, window_bounds = array<i64: 1, 128>}, {pipeline_mode = #tpu.pipeline_mode<synchronous>, transform_indices = @transform_2, window_bounds = array<i64: 64, 96>}, {pipeline_mode = #tpu.pipeline_mode<synchronous>, transform_indices = @transform_3, window_bounds = array<i64: 64, 1>}, {pipeline_mode = #tpu.pipeline_mode<synchronous>, transform_indices = @transform_4, window_bounds = array<i64: 32, 64>}, {pipeline_mode = #tpu.pipeline_mode<synchronous>, transform_indices = @transform_5, window_bounds = array<i64: 32, 1>}, {pipeline_mode = #tpu.pipeline_mode<synchronous>, transform_indices = @transform_6, window_bounds = array<i64: 16, 32>}, {pipeline_mode = #tpu.pipeline_mode<synchronous>, transform_indices = @transform_7, window_bounds = array<i64: 16, 1>}, {pipeline_mode = #tpu.pipeline_mode<synchronous>, transform_indices = @transform_8, window_bounds = array<i64: 8, 16>}, {pipeline_mode = #tpu.pipeline_mode<synchronous>, transform_indices = @transform_9, window_bounds = array<i64: 8, 1>}, {pipeline_mode = #tpu.pipeline_mode<synchronous>, transform_indices = @transform_10, window_bounds = array<i64: 1, 8>}, {pipeline_mode = #tpu.pipeline_mode<synchronous>, transform_indices = @transform_11, window_bounds = array<i64: 1, 1>}, {transform_indices = @transform_12, window_bounds = array<i64: 1, 128>}]} {
    %c0 = arith.constant 0 : index
    %c0_0 = arith.constant 0 : index
    %0 = vector.load %arg1[%c0, %c0_0] : memref<1x128xi32, #tpu.memory_space<vmem>>, vector<1x128xi32>
    %c0_1 = arith.constant 0 : index
    %c0_2 = arith.constant 0 : index
    %1 = vector.load %arg2[%c0_1, %c0_2] : memref<1x128xi32, #tpu.memory_space<vmem>>, vector<1x128xi32>
    %2 = tpu.iota {dimensions = array<i32: 0>} : vector<96x128xi32>
    %3 = vector.broadcast %0 : vector<1x128xi32> to vector<96x128xi32>
    %4 = arith.cmpi eq, %2, %3 : vector<96x128xi32>
    %5 = vector.broadcast %1 : vector<1x128xi32> to vector<96x128xi32>
    %6 = arith.cmpi eq, %2, %5 : vector<96x128xi32>
    %7 = arith.ori %4, %6 : vector<96x128xi1>
    %8 = arith.extui %7 : vector<96x128xi1> to vector<96x128xi32>
    %9 = arith.sitofp %8 : vector<96x128xi32> to vector<96x128xf32>
    %10 = arith.truncf %9 : vector<96x128xf32> to vector<96x128xbf16>
    %c0_3 = arith.constant 0 : index
    %c0_4 = arith.constant 0 : index
    %11 = vector.load %arg3[%c0_3, %c0_4] : memref<64x96xbf16, #tpu.memory_space<vmem>>, vector<64x96xbf16>
    %cst = arith.constant dense<0.000000e+00> : vector<64x128xf32>
    %12 = tpu.matmul %11, %10, %cst {dimension_numbers = #tpu.dot_dimension_numbers<[1], [0], [0], [1], [0, 0, 1, 1], [], []>} : vector<64x96xbf16>, vector<96x128xbf16>, vector<64x128xf32> -> vector<64x128xf32>
    %c0_5 = arith.constant 0 : index
    %c0_6 = arith.constant 0 : index
    %13 = vector.load %arg4[%c0_5, %c0_6] : memref<64x1xf32, #tpu.memory_space<vmem>>, vector<64x1xf32>
    %14 = vector.broadcast %13 : vector<64x1xf32> to vector<64x128xf32>
    %15 = arith.addf %12, %14 : vector<64x128xf32>
    %cst_7 = arith.constant 0.000000e+00 : f32
    %16 = vector.broadcast %cst_7 : f32 to vector<64x128xf32>
    %17 = arith.maximumf %15, %16 : vector<64x128xf32>
    %c0_8 = arith.constant 0 : index
    %c0_9 = arith.constant 0 : index
    %18 = vector.load %arg5[%c0_8, %c0_9] : memref<32x64xbf16, #tpu.memory_space<vmem>>, vector<32x64xbf16>
    %19 = arith.truncf %17 : vector<64x128xf32> to vector<64x128xbf16>
    %cst_10 = arith.constant dense<0.000000e+00> : vector<32x128xf32>
    %20 = tpu.matmul %18, %19, %cst_10 {dimension_numbers = #tpu.dot_dimension_numbers<[1], [0], [0], [1], [0, 0, 1, 1], [], []>} : vector<32x64xbf16>, vector<64x128xbf16>, vector<32x128xf32> -> vector<32x128xf32>
    %c0_11 = arith.constant 0 : index
    %c0_12 = arith.constant 0 : index
    %21 = vector.load %arg6[%c0_11, %c0_12] : memref<32x1xf32, #tpu.memory_space<vmem>>, vector<32x1xf32>
    %22 = vector.broadcast %21 : vector<32x1xf32> to vector<32x128xf32>
    %23 = arith.addf %20, %22 : vector<32x128xf32>
    %cst_13 = arith.constant 0.000000e+00 : f32
    %24 = vector.broadcast %cst_13 : f32 to vector<32x128xf32>
    %25 = arith.maximumf %23, %24 : vector<32x128xf32>
    %c0_14 = arith.constant 0 : index
    %c0_15 = arith.constant 0 : index
    %26 = vector.load %arg7[%c0_14, %c0_15] : memref<16x32xbf16, #tpu.memory_space<vmem>>, vector<16x32xbf16>
    %27 = arith.truncf %25 : vector<32x128xf32> to vector<32x128xbf16>
    %cst_16 = arith.constant dense<0.000000e+00> : vector<16x128xf32>
    %28 = tpu.matmul %26, %27, %cst_16 {dimension_numbers = #tpu.dot_dimension_numbers<[1], [0], [0], [1], [0, 0, 1, 1], [], []>} : vector<16x32xbf16>, vector<32x128xbf16>, vector<16x128xf32> -> vector<16x128xf32>
    %c0_17 = arith.constant 0 : index
    %c0_18 = arith.constant 0 : index
    %29 = vector.load %arg8[%c0_17, %c0_18] : memref<16x1xf32, #tpu.memory_space<vmem>>, vector<16x1xf32>
    %30 = vector.broadcast %29 : vector<16x1xf32> to vector<16x128xf32>
    %31 = arith.addf %28, %30 : vector<16x128xf32>
    %cst_19 = arith.constant 0.000000e+00 : f32
    %32 = vector.broadcast %cst_19 : f32 to vector<16x128xf32>
    %33 = arith.maximumf %31, %32 : vector<16x128xf32>
    %c0_20 = arith.constant 0 : index
    %c0_21 = arith.constant 0 : index
    %34 = vector.load %arg9[%c0_20, %c0_21] : memref<8x16xbf16, #tpu.memory_space<vmem>>, vector<8x16xbf16>
    %35 = arith.truncf %33 : vector<16x128xf32> to vector<16x128xbf16>
    %cst_22 = arith.constant dense<0.000000e+00> : vector<8x128xf32>
    %36 = tpu.matmul %34, %35, %cst_22 {dimension_numbers = #tpu.dot_dimension_numbers<[1], [0], [0], [1], [0, 0, 1, 1], [], []>} : vector<8x16xbf16>, vector<16x128xbf16>, vector<8x128xf32> -> vector<8x128xf32>
    %c0_23 = arith.constant 0 : index
    %c0_24 = arith.constant 0 : index
    %37 = vector.load %arg10[%c0_23, %c0_24] : memref<8x1xf32, #tpu.memory_space<vmem>>, vector<8x1xf32>
    %38 = vector.broadcast %37 : vector<8x1xf32> to vector<8x128xf32>
    %39 = arith.addf %36, %38 : vector<8x128xf32>
    %cst_25 = arith.constant 0.000000e+00 : f32
    %40 = vector.broadcast %cst_25 : f32 to vector<8x128xf32>
    %41 = arith.maximumf %39, %40 : vector<8x128xf32>
    %c0_26 = arith.constant 0 : index
    %c0_27 = arith.constant 0 : index
    %42 = vector.load %arg11[%c0_26, %c0_27] : memref<1x8xbf16, #tpu.memory_space<vmem>>, vector<1x8xbf16>
    %43 = arith.truncf %41 : vector<8x128xf32> to vector<8x128xbf16>
    %cst_28 = arith.constant dense<0.000000e+00> : vector<1x128xf32>
    %44 = tpu.matmul %42, %43, %cst_28 {dimension_numbers = #tpu.dot_dimension_numbers<[1], [0], [0], [1], [0, 0, 1, 1], [], []>} : vector<1x8xbf16>, vector<8x128xbf16>, vector<1x128xf32> -> vector<1x128xf32>
    %c0_29 = arith.constant 0 : index
    %c0_30 = arith.constant 0 : index
    %45 = vector.load %arg12[%c0_29, %c0_30] : memref<1x1xf32, #tpu.memory_space<vmem>>, vector<1x1xf32>
    %46 = vector.broadcast %45 : vector<1x1xf32> to vector<1x128xf32>
    %47 = arith.addf %44, %46 : vector<1x128xf32>
    %48 = arith.negf %47 : vector<1x128xf32>
    %49 = math.exp %48 : vector<1x128xf32>
    %cst_31 = arith.constant 1.000000e+00 : f32
    %50 = vector.broadcast %cst_31 : f32 to vector<1x128xf32>
    %51 = arith.addf %50, %49 : vector<1x128xf32>
    %52 = arith.divf %50, %51 : vector<1x128xf32>
    %c0_32 = arith.constant 0 : index
    %c0_33 = arith.constant 0 : index
    %53 = vector.load %arg13[%c0_32, %c0_33] : memref<1x128xf32, #tpu.memory_space<vmem>>, vector<1x128xf32>
    tpu.vector_store %arg13[%c0_32, %c0_33], %52 {strides = array<i32>} : memref<1x128xf32, #tpu.memory_space<vmem>>, vector<1x128xf32>,
    return
  }
  func.func @transform_0(%arg0: i32) -> (i32, i32) {
    %c0_i32 = arith.constant 0 : i32
    %c0_i32_0 = arith.constant 0 : i32
    return %c0_i32, %arg0 : i32, i32
  }
  func.func @transform_1(%arg0: i32) -> (i32, i32) {
    %c0_i32 = arith.constant 0 : i32
    %c0_i32_0 = arith.constant 0 : i32
    return %c0_i32, %arg0 : i32, i32
  }
  func.func @transform_2(%arg0: i32) -> (i32, i32) {
    %c0_i32 = arith.constant 0 : i32
    %c0_i32_0 = arith.constant 0 : i32
    %c0_i32_1 = arith.constant 0 : i32
    return %c0_i32, %c0_i32_0 : i32, i32
  }
  func.func @transform_3(%arg0: i32) -> (i32, i32) {
    %c0_i32 = arith.constant 0 : i32
    %c0_i32_0 = arith.constant 0 : i32
    %c0_i32_1 = arith.constant 0 : i32
    return %c0_i32, %c0_i32_0 : i32, i32
  }
  func.func @transform_4(%arg0: i32) -> (i32, i32) {
    %c0_i32 = arith.constant 0 : i32
    %c0_i32_0 = arith.constant 0 : i32
    %c0_i32_1 = arith.constant 0 : i32
    return %c0_i32, %c0_i32_0 : i32, i32
  }
  func.func @transform_5(%arg0: i32) -> (i32, i32) {
    %c0_i32 = arith.constant 0 : i32
    %c0_i32_0 = arith.constant 0 : i32
    %c0_i32_1 = arith.constant 0 : i32
    return %c0_i32, %c0_i32_0 : i32, i32
  }
  func.func @transform_6(%arg0: i32) -> (i32, i32) {
    %c0_i32 = arith.constant 0 : i32
    %c0_i32_0 = arith.constant 0 : i32
    %c0_i32_1 = arith.constant 0 : i32
    return %c0_i32, %c0_i32_0 : i32, i32
  }
  func.func @transform_7(%arg0: i32) -> (i32, i32) {
    %c0_i32 = arith.constant 0 : i32
    %c0_i32_0 = arith.constant 0 : i32
    %c0_i32_1 = arith.constant 0 : i32
    return %c0_i32, %c0_i32_0 : i32, i32
  }
  func.func @transform_8(%arg0: i32) -> (i32, i32) {
    %c0_i32 = arith.constant 0 : i32
    %c0_i32_0 = arith.constant 0 : i32
    %c0_i32_1 = arith.constant 0 : i32
    return %c0_i32, %c0_i32_0 : i32, i32
  }
  func.func @transform_9(%arg0: i32) -> (i32, i32) {
    %c0_i32 = arith.constant 0 : i32
    %c0_i32_0 = arith.constant 0 : i32
    %c0_i32_1 = arith.constant 0 : i32
    return %c0_i32, %c0_i32_0 : i32, i32
  }
  func.func @transform_10(%arg0: i32) -> (i32, i32) {
    %c0_i32 = arith.constant 0 : i32
    %c0_i32_0 = arith.constant 0 : i32
    %c0_i32_1 = arith.constant 0 : i32
    return %c0_i32, %c0_i32_0 : i32, i32
  }
  func.func @transform_11(%arg0: i32) -> (i32, i32) {
    %c0_i32 = arith.constant 0 : i32
    %c0_i32_0 = arith.constant 0 : i32
    %c0_i32_1 = arith.constant 0 : i32
    return %c0_i32, %c0_i32_0 : i32, i32
  }
  func.func @transform_12(%arg0: i32) -> (i32, i32) {
    %c0_i32 = arith.constant 0 : i32
    %c0_i32_0 = arith.constant 0 : i32
    return %c0_i32, %arg0 : i32, i32
  }
}

</mosaic_0001>

<llo_original>
// kernel: ncf_forward.1
$region0: #{ncf_forward.1}
  #allocation0 [shape = 'u32[]', space=smem, size = 0x4, offset = 0x4, fixed_abs, tag = 'smem constant byte address 0x4 - core index']
  #allocation1 [shape = 'u32[144,128]{1,0:T(1,128)}', space=vmem, size = 0x12000, scoped, tag = 'internal scratch']
  #allocation2 [shape = 'f32[1,1]{1,0:T(1,128)S(1)}', space=vmem, size = 0x200, scoped, tag = 'scoped memory for ncf_forward.1']
  %s0 = inlined_call_operand.vmem [shape: s32[1,128], index: 0, kind: input, shape index: {}]
  %s1 = inlined_call_operand.vmem [shape: s32[1,128], index: 1, kind: input, shape index: {}]
  %s2 = inlined_call_operand.vmem [shape: bf16[64,96], index: 2, kind: input, shape index: {}]
  %s3 = inlined_call_operand.vmem [shape: f32[64,1], index: 3, kind: input, shape index: {}]
  %s4 = inlined_call_operand.vmem [shape: bf16[32,64], index: 4, kind: input, shape index: {}]
  %s5 = inlined_call_operand.vmem [shape: f32[32,1], index: 5, kind: input, shape index: {}]
  %s6 = inlined_call_operand.vmem [shape: bf16[16,32], index: 6, kind: input, shape index: {}]
  %s7 = inlined_call_operand.vmem [shape: f32[16,1], index: 7, kind: input, shape index: {}]
  %s8 = inlined_call_operand.vmem [shape: bf16[8,16], index: 8, kind: input, shape index: {}]
  %s9 = inlined_call_operand.vmem [shape: f32[8,1], index: 9, kind: input, shape index: {}]
  %s10 = inlined_call_operand.vmem [shape: bf16[1,8], index: 10, kind: input, shape index: {}]
  %s11 = inlined_call_operand.<no memory space> [shape: f32[1,1], index: 11, kind: input, shape index: {}]
  %s12 = inlined_call_operand.vmem [shape: f32[1,128], index: 12, kind: output, shape index: {}]
  %s13 = sld [smem:[#allocation0]]
  $region58: #{ncf_forward.1} parent=0
    _
  %s15 = ssub.s32 1, %s13
  %s16 = scalar_select 0, %s15, %s13
  %v17 = vstv %s11
  %18 = vst [vmem:[#allocation2] sm:$0x1] %v17
  // Predicated region
  $region2: #{ncf_forward.1} parent=0 // pred_check
    _
  $region3: #{ncf_forward.1} parent=0 // pred_check_branch
    %20 = sbr.rel (0) target = $region5
  $region4: #{ncf_forward.1} parent=0 // pred_region
    _
  $region5: #{ncf_forward.1} parent=0 // pred_fallthru
    _
  // Predicated region
  $region6: #{ncf_forward.1} parent=0 // pred_check
    _
  $region7: #{ncf_forward.1} parent=0 // pred_check_branch
    %22 = sbr.rel (0) target = $region9
  $region8: #{ncf_forward.1} parent=0 // pred_region
    _
  $region9: #{ncf_forward.1} parent=0 // pred_fallthru
    _
  // Predicated region
  $region10: #{ncf_forward.1} parent=0 // pred_check
    _
  $region11: #{ncf_forward.1} parent=0 // pred_check_branch
    %24 = sbr.rel (0) target = $region13
  $region12: #{ncf_forward.1} parent=0 // pred_region
    _
  $region13: #{ncf_forward.1} parent=0 // pred_fallthru
    _
  // Predicated region
  $region14: #{ncf_forward.1} parent=0 // pred_check
    _
  $region15: #{ncf_forward.1} parent=0 // pred_check_branch
    %26 = sbr.rel (0) target = $region17
  $region16: #{ncf_forward.1} parent=0 // pred_region
    _
  $region17: #{ncf_forward.1} parent=0 // pred_fallthru
    _
  // Predicated region
  $region18: #{ncf_forward.1} parent=0 // pred_check
    _
  $region19: #{ncf_forward.1} parent=0 // pred_check_branch
    %28 = sbr.rel (0) target = $region21
  $region20: #{ncf_forward.1} parent=0 // pred_region
    _
  $region21: #{ncf_forward.1} parent=0 // pred_fallthru
    _
  // Predicated region
  $region22: #{ncf_forward.1} parent=0 // pred_check
    _
  $region23: #{ncf_forward.1} parent=0 // pred_check_branch
    %30 = sbr.rel (0) target = $region25
  $region24: #{ncf_forward.1} parent=0 // pred_region
    _
  $region25: #{ncf_forward.1} parent=0 // pred_fallthru
    _
  // Predicated region
  $region26: #{ncf_forward.1} parent=0 // pred_check
    _
  $region27: #{ncf_forward.1} parent=0 // pred_check_branch
    %32 = sbr.rel (0) target = $region29
  $region28: #{ncf_forward.1} parent=0 // pred_region
    _
  $region29: #{ncf_forward.1} parent=0 // pred_fallthru
    _
  // Predicated region
  $region30: #{ncf_forward.1} parent=0 // pred_check
    _
  $region31: #{ncf_forward.1} parent=0 // pred_check_branch
    %34 = sbr.rel (0) target = $region33
  $region32: #{ncf_forward.1} parent=0 // pred_region
    _
  $region33: #{ncf_forward.1} parent=0 // pred_fallthru
    _
  // Predicated region
  $region34: #{ncf_forward.1} parent=0 // pred_check
    _
  $region35: #{ncf_forward.1} parent=0 // pred_check_branch
    %36 = sbr.rel (0) target = $region37
  $region36: #{ncf_forward.1} parent=0 // pred_region
    _
  $region37: #{ncf_forward.1} parent=0 // pred_fallthru
    _
  // Predicated region
  $region38: #{ncf_forward.1} parent=0 // pred_check
    _
  $region39: #{ncf_forward.1} parent=0 // pred_check_branch
    %38 = sbr.rel (0) target = $region41
  $region40: #{ncf_forward.1} parent=0 // pred_region
    _
  $region41: #{ncf_forward.1} parent=0 // pred_fallthru
    _
  // Predicated region
  $region42: #{ncf_forward.1} parent=0 // pred_check
    _
  $region43: #{ncf_forward.1} parent=0 // pred_check_branch
    %40 = sbr.rel (0) target = $region45
  $region44: #{ncf_forward.1} parent=0 // pred_region
    _
  $region45: #{ncf_forward.1} parent=0 // pred_fallthru
    _
  // Predicated region
  $region46: #{ncf_forward.1} parent=0 // pred_check
    _
  $region47: #{ncf_forward.1} parent=0 // pred_check_branch
    %42 = sbr.rel (0) target = $region49
  $region48: #{ncf_forward.1} parent=0 // pred_region
    _
  $region49: #{ncf_forward.1} parent=0 // pred_fallthru
    _
  %v44 = vld [vmem:[%s0] sm:$0x1]
  %v45 = vld [vmem:[%s1] sm:$0x1]
  %v46 = vlaneseq
  %v47 = vshrl.u32 %v46, 7
  %v48 = vadd.s32 %v47, 8
  %v49 = vadd.s32 %v47, 16
  %v50 = vadd.s32 %v47, 24
  %v51 = vadd.s32 %v47, 32
  %v52 = vadd.s32 %v47, 40
  %v53 = vadd.s32 %v47, 48
  %v54 = vadd.s32 %v47, 56
  %v55 = vadd.s32 %v47, 64
  %v56 = vadd.s32 %v47, 72
  %v57 = vadd.s32 %v47, 80
  %v58 = vadd.s32 %v47, 88
  %v59 = vlaneseq
  %v60 = vshrl.u32 %v59, 7
  %v61 = vsub.s32 0, %v60
  %v62 = vrot.slane %v44, %v61
  %vm63 = vcmp.eq.s32.totalorder %v47, %v62
  %vm64 = vcmp.eq.s32.totalorder %v48, %v62
  %vm65 = vcmp.eq.s32.totalorder %v49, %v62
  %vm66 = vcmp.eq.s32.totalorder %v50, %v62
  %vm67 = vcmp.eq.s32.totalorder %v51, %v62
  %vm68 = vcmp.eq.s32.totalorder %v52, %v62
  %vm69 = vcmp.eq.s32.totalorder %v53, %v62
  %vm70 = vcmp.eq.s32.totalorder %v54, %v62
  %vm71 = vcmp.eq.s32.totalorder %v55, %v62
  %vm72 = vcmp.eq.s32.totalorder %v56, %v62
  %vm73 = vcmp.eq.s32.totalorder %v57, %v62
  %vm74 = vcmp.eq.s32.totalorder %v58, %v62
  %v75 = vlaneseq
  %v76 = vshrl.u32 %v75, 7
  %v77 = vsub.s32 0, %v76
  %v78 = vrot.slane %v45, %v77
  %vm79 = vcmp.eq.s32.totalorder %v47, %v78
  %vm80 = vcmp.eq.s32.totalorder %v48, %v78
  %vm81 = vcmp.eq.s32.totalorder %v49, %v78
  %vm82 = vcmp.eq.s32.totalorder %v50, %v78
  %vm83 = vcmp.eq.s32.totalorder %v51, %v78
  %vm84 = vcmp.eq.s32.totalorder %v52, %v78
  %vm85 = vcmp.eq.s32.totalorder %v53, %v78
  %vm86 = vcmp.eq.s32.totalorder %v54, %v78
  %vm87 = vcmp.eq.s32.totalorder %v55, %v78
  %vm88 = vcmp.eq.s32.totalorder %v56, %v78
  %vm89 = vcmp.eq.s32.totalorder %v57, %v78
  %vm90 = vcmp.eq.s32.totalorder %v58, %v78
  %vm91 = vmor %vm63, %vm79
  %vm92 = vmor %vm64, %vm80
  %vm93 = vmor %vm65, %vm81
  %vm94 = vmor %vm66, %vm82
  %vm95 = vmor %vm67, %vm83
  %vm96 = vmor %vm68, %vm84
  %vm97 = vmor %vm69, %vm85
  %vm98 = vmor %vm70, %vm86
  %vm99 = vmor %vm71, %vm87
  %vm100 = vmor %vm72, %vm88
  %vm101 = vmor %vm73, %vm89
  %vm102 = vmor %vm74, %vm90
  %v103 = vsel %vm91, 1, 0
  %v104 = vsel %vm92, 1, 0
  %v105 = vsel %vm93, 1, 0
  %v106 = vsel %vm94, 1, 0
  %v107 = vsel %vm95, 1, 0
  %v108 = vsel %vm96, 1, 0
  %v109 = vsel %vm97, 1, 0
  %v110 = vsel %vm98, 1, 0
  %v111 = vsel %vm99, 1, 0
  %v112 = vsel %vm100, 1, 0
  %v113 = vsel %vm101, 1, 0
  %v114 = vsel %vm102, 1, 0
  %v115 = vcvt.s32.f32 %v103
  %v116 = vcvt.s32.f32 %v104
  %v117 = vcvt.s32.f32 %v105
  %v118 = vcvt.s32.f32 %v106
  %v119 = vcvt.s32.f32 %v107
  %v120 = vcvt.s32.f32 %v108
  %v121 = vcvt.s32.f32 %v109
  %v122 = vcvt.s32.f32 %v110
  %v123 = vcvt.s32.f32 %v111
  %v124 = vcvt.s32.f32 %v112
  %v125 = vcvt.s32.f32 %v113
  %v126 = vcvt.s32.f32 %v114
  %v127 = vpack.c.bf16 %v116, %v115
  %v128 = vpack.c.bf16 %v118, %v117
  %v129 = vpack.c.bf16 %v120, %v119
  %v130 = vpack.c.bf16 %v122, %v121
  %v131 = vpack.c.bf16 %v124, %v123
  %v132 = vpack.c.bf16 %v126, %v125
  %v133 = vld [vmem:[%s2] sm:$0xf]
  %v134 = vld [vmem:[%s2 + $0x4] sm:$0xf]
  %v135 = vld [vmem:[%s2 + $0x8] sm:$0xf]
  %v136 = vld [vmem:[%s2 + $0xc] sm:$0xf]
  %v137 = vld [vmem:[%s2 + $0x10] sm:$0xf]
  %v138 = vld [vmem:[%s2 + $0x14] sm:$0xf]
  %v139 = vld [vmem:[%s2 + $0x18] sm:$0xf]
  %v140 = vld [vmem:[%s2 + $0x1c] sm:$0xf]
  %v141 = vld [vmem:[%s3] sm:$0xff]
  %v142 = vld [vmem:[%s3 + $0x8] sm:$0xff]
  %v143 = vld [vmem:[%s3 + $0x10] sm:$0xff]
  %v144 = vld [vmem:[%s3 + $0x18] sm:$0xff]
  %v145 = vld [vmem:[%s3 + $0x20] sm:$0xff]
  %v146 = vld [vmem:[%s3 + $0x28] sm:$0xff]
  %v147 = vld [vmem:[%s3 + $0x30] sm:$0xff]
  %v148 = vld [vmem:[%s3 + $0x38] sm:$0xff]
  %150 = vset.pattern.permute.xlu0 0
  %151 = vperm.xlu0 %150, %v141
  %v152 = vpop.permute.xlu0 %151
  %155 = vset.pattern.permute.xlu0 0
  %156 = vperm.xlu0 %155, %v142
  %v157 = vpop.permute.xlu0 %156
  %160 = vset.pattern.permute.xlu0 0
  %161 = vperm.xlu0 %160, %v143
  %v162 = vpop.permute.xlu0 %161
  %165 = vset.pattern.permute.xlu0 0
  %166 = vperm.xlu0 %165, %v144
  %v167 = vpop.permute.xlu0 %166
  %170 = vset.pattern.permute.xlu0 0
  %171 = vperm.xlu0 %170, %v145
  %v172 = vpop.permute.xlu0 %171
  %175 = vset.pattern.permute.xlu0 0
  %176 = vperm.xlu0 %175, %v146
  %v177 = vpop.permute.xlu0 %176
  %180 = vset.pattern.permute.xlu0 0
  %181 = vperm.xlu0 %180, %v147
  %v182 = vpop.permute.xlu0 %181
  %185 = vset.pattern.permute.xlu0 0
  %186 = vperm.xlu0 %185, %v148
  %v187 = vpop.permute.xlu0 %186
  %v197 = vunpack.c.l.b16 %v133
  %v198 = vunpack.c.l.b16 %v134
  %v199 = vunpack.c.l.b16 %v135
  %v200 = vunpack.c.l.b16 %v136
  %v201 = vunpack.c.l.b16 %v137
  %v202 = vunpack.c.l.b16 %v138
  %v203 = vunpack.c.l.b16 %v139
  %v204 = vunpack.c.l.b16 %v140
  %v205 = vpack.c.b16 %v198, %v197
  %v206 = vpack.c.b16 %v200, %v199
  %v207 = vpack.c.b16 %v202, %v201
  %v208 = vpack.c.b16 %v204, %v203
  %vm209 = vcmask 785408
  %v211 = vsel %vm209, %v205, 0
  %v214 = vsel %vm209, %v206, 0
  %v217 = vsel %vm209, %v207, 0
  %v220 = vsel %vm209, %v208, 0
  %222 = vmatprep.subr.bf16.mxu0 0
  %223 = vmatpush1.bf16.msra.mxu0 0
  %224 = vmatprep.subr.bf16.mxu0 0
  %225 = vmatpush1.bf16.msra.mxu0 0
  %226 = vmatprep.subr.bf16.mxu0 0
  %227 = vmatpush1.bf16.msra.mxu0 %v132
  %228 = vmatprep.subr.bf16.mxu0 0
  %229 = vmatpush1.bf16.msra.mxu0 %v131
  %230 = vmatprep.subr.bf16.mxu0 0
  %231 = vmatpush1.bf16.msra.mxu0 %v130
  %232 = vmatprep.subr.bf16.mxu0 0
  %233 = vmatpush1.bf16.msra.mxu0 %v129
  %234 = vmatprep.subr.bf16.mxu0 0
  %235 = vmatpush1.bf16.msra.mxu0 %v128
  %236 = vmatprep.subr.bf16.mxu0 0
  %237 = vmatpush1.bf16.msra.mxu0 %v127
  %238 = vmatprep.subr.bf16.mxu0 0
  %239 = vmatpush2.bf16.msra.mxu0 0
  %240 = vmatprep.subr.bf16.mxu0 0
  %241 = vmatpush2.bf16.msra.mxu0 0
  %242 = vmatprep.subr.bf16.mxu0 0
  %243 = vmatpush2.bf16.msra.mxu0 0
  %244 = vmatprep.subr.bf16.mxu0 0
  %245 = vmatpush2.bf16.msra.mxu0 0
  %246 = vmatprep.subr.bf16.mxu0 0
  %247 = vmatpush2.bf16.msra.mxu0 0
  %248 = vmatprep.subr.bf16.mxu0 0
  %249 = vmatpush2.bf16.msra.mxu0 0
  %250 = vmatprep.subr.bf16.mxu0 0
  %251 = vmatpush2.bf16.msra.mxu0 0
  %252 = vmatprep.subr.bf16.mxu0 0
  %253 = vmatpush2.bf16.msra.mxu0 0
  %254 = vmatprep.mubr.bf16.mxu0 0
  %255 = vmatmul.mubr.bf16.gmra.mxu0 %v211
  %v256 = vpop.f32.mrf.mxu0
  %v257 = vadd.f32 %v152, %v256
  %v258 = vpop.f32.mrf.mxu0
  %v259 = vpop.f32.mrf.mxu0
  %v260 = vadd.f32 %v157, %v259
  %v261 = vpop.f32.mrf.mxu0
  %262 = vmatprep.mubr.bf16.mxu0 0
  %263 = vmatmul.mubr.bf16.gmra.mxu0 %v214
  %v264 = vpop.f32.mrf.mxu0
  %v265 = vadd.f32 %v162, %v264
  %v266 = vpop.f32.mrf.mxu0
  %v267 = vpop.f32.mrf.mxu0
  %v268 = vadd.f32 %v167, %v267
  %v269 = vpop.f32.mrf.mxu0
  %270 = vmatprep.mubr.bf16.mxu0 0
  %271 = vmatmul.mubr.bf16.gmra.mxu0 %v217
  %v272 = vpop.f32.mrf.mxu0
  %v273 = vadd.f32 %v172, %v272
  %v274 = vpop.f32.mrf.mxu0
  %v275 = vpop.f32.mrf.mxu0
  %v276 = vadd.f32 %v177, %v275
  %v277 = vpop.f32.mrf.mxu0
  %278 = vmatprep.mubr.bf16.mxu0 0
  %279 = vmatmul.mubr.bf16.gmra.mxu0 %v220
  %v280 = vpop.f32.mrf.mxu0
  %v281 = vadd.f32 %v182, %v280
  %v282 = vpop.f32.mrf.mxu0
  %v283 = vpop.f32.mrf.mxu0
  %v284 = vadd.f32 %v187, %v283
  %v285 = vpop.f32.mrf.mxu0
  %286 = vdwg.mxu0
  %v287 = vmax.f32 %v257, 0.0
  %v288 = vmax.f32 %v260, 0.0
  %v289 = vmax.f32 %v265, 0.0
  %v290 = vmax.f32 %v268, 0.0
  %v291 = vmax.f32 %v273, 0.0
  %v292 = vmax.f32 %v276, 0.0
  %v293 = vmax.f32 %v281, 0.0
  %v294 = vmax.f32 %v284, 0.0
  %v295 = vld [vmem:[%s4] sm:$0xf]
  %v296 = vld [vmem:[%s4 + $0x4] sm:$0xf]
  %v297 = vld [vmem:[%s4 + $0x8] sm:$0xf]
  %v298 = vld [vmem:[%s4 + $0xc] sm:$0xf]
  %v299 = vpack.c.bf16 %v288, %v287
  %v300 = vpack.c.bf16 %v290, %v289
  %v301 = vpack.c.bf16 %v292, %v291
  %v302 = vpack.c.bf16 %v294, %v293
  %v303 = vld [vmem:[%s5] sm:$0xff]
  %v304 = vld [vmem:[%s5 + $0x8] sm:$0xff]
  %v305 = vld [vmem:[%s5 + $0x10] sm:$0xff]
  %v306 = vld [vmem:[%s5 + $0x18] sm:$0xff]
  %308 = vset.pattern.permute.xlu0 0
  %309 = vperm.xlu0 %308, %v303
  %v310 = vpop.permute.xlu0 %309
  %313 = vset.pattern.permute.xlu0 0
  %314 = vperm.xlu0 %313, %v304
  %v315 = vpop.permute.xlu0 %314
  %318 = vset.pattern.permute.xlu0 0
  %319 = vperm.xlu0 %318, %v305
  %v320 = vpop.permute.xlu0 %319
  %323 = vset.pattern.permute.xlu0 0
  %324 = vperm.xlu0 %323, %v306
  %v325 = vpop.permute.xlu0 %324
  %v331 = vunpack.c.l.b16 %v295
  %v332 = vunpack.c.l.b16 %v296
  %v333 = vunpack.c.l.b16 %v297
  %v334 = vunpack.c.l.b16 %v298
  %v335 = vpack.c.b16 %v332, %v331
  %v336 = vpack.c.b16 %v334, %v333
  %vm337 = vcmask 523264
  %v339 = vsel %vm337, %v335, 0
  %v342 = vsel %vm337, %v336, 0
  %344 = vmatprep.subr.bf16.mxu0 0
  %345 = vmatpush1.bf16.msra.mxu0 0
  %346 = vmatprep.subr.bf16.mxu0 0
  %347 = vmatpush1.bf16.msra.mxu0 0
  %348 = vmatprep.subr.bf16.mxu0 0
  %349 = vmatpush1.bf16.msra.mxu0 0
  %350 = vmatprep.subr.bf16.mxu0 0
  %351 = vmatpush1.bf16.msra.mxu0 0
  %352 = vmatprep.subr.bf16.mxu0 0
  %353 = vmatpush1.bf16.msra.mxu0 %v302
  %354 = vmatprep.subr.bf16.mxu0 0
  %355 = vmatpush1.bf16.msra.mxu0 %v301
  %356 = vmatprep.subr.bf16.mxu0 0
  %357 = vmatpush1.bf16.msra.mxu0 %v300
  %358 = vmatprep.subr.bf16.mxu0 0
  %359 = vmatpush1.bf16.msra.mxu0 %v299
  %360 = vmatprep.subr.bf16.mxu0 0
  %361 = vmatpush2.bf16.msra.mxu0 0
  %362 = vmatprep.subr.bf16.mxu0 0
  %363 = vmatpush2.bf16.msra.mxu0 0
  %364 = vmatprep.subr.bf16.mxu0 0
  %365 = vmatpush2.bf16.msra.mxu0 0
  %366 = vmatprep.subr.bf16.mxu0 0
  %367 = vmatpush2.bf16.msra.mxu0 0
  %368 = vmatprep.subr.bf16.mxu0 0
  %369 = vmatpush2.bf16.msra.mxu0 0
  %370 = vmatprep.subr.bf16.mxu0 0
  %371 = vmatpush2.bf16.msra.mxu0 0
  %372 = vmatprep.subr.bf16.mxu0 0
  %373 = vmatpush2.bf16.msra.mxu0 0
  %374 = vmatprep.subr.bf16.mxu0 0
  %375 = vmatpush2.bf16.msra.mxu0 0
  %376 = vmatprep.mubr.bf16.mxu0 0
  %377 = vmatmul.mubr.bf16.gmra.mxu0 %v339
  %v378 = vpop.f32.mrf.mxu0
  %v379 = vadd.f32 %v310, %v378
  %v380 = vpop.f32.mrf.mxu0
  %v381 = vpop.f32.mrf.mxu0
  %v382 = vadd.f32 %v315, %v381
  %v383 = vpop.f32.mrf.mxu0
  %384 = vmatprep.mubr.bf16.mxu0 0
  %385 = vmatmul.mubr.bf16.gmra.mxu0 %v342
  %v386 = vpop.f32.mrf.mxu0
  %v387 = vadd.f32 %v320, %v386
  %v388 = vpop.f32.mrf.mxu0
  %v389 = vpop.f32.mrf.mxu0
  %v390 = vadd.f32 %v325, %v389
  %v391 = vpop.f32.mrf.mxu0
  %392 = vdwg.mxu0
  %v393 = vmax.f32 %v379, 0.0
  %v394 = vmax.f32 %v382, 0.0
  %v395 = vmax.f32 %v387, 0.0
  %v396 = vmax.f32 %v390, 0.0
  %v397 = vld [vmem:[%s6] sm:$0xf]
  %v398 = vld [vmem:[%s6 + $0x4] sm:$0xf]
  %v399 = vpack.c.bf16 %v394, %v393
  %v400 = vpack.c.bf16 %v396, %v395
  %v401 = vld [vmem:[%s7] sm:$0xff]
  %v402 = vld [vmem:[%s7 + $0x8] sm:$0xff]
  %404 = vset.pattern.permute.xlu0 0
  %405 = vperm.xlu0 %404, %v401
  %v406 = vpop.permute.xlu0 %405
  %409 = vset.pattern.permute.xlu0 0
  %410 = vperm.xlu0 %409, %v402
  %v411 = vpop.permute.xlu0 %410
  %v415 = vunpack.c.l.b16 %v397
  %v416 = vunpack.c.l.b16 %v398
  %v417 = vpack.c.b16 %v416, %v415
  %vm418 = vcmask 261120
  %v420 = vsel %vm418, %v417, 0
  %422 = vmatprep.subr.bf16.mxu0 0
  %423 = vmatpush1.bf16.msra.mxu0 0
  %424 = vmatprep.subr.bf16.mxu0 0
  %425 = vmatpush1.bf16.msra.mxu0 0
  %426 = vmatprep.subr.bf16.mxu0 0
  %427 = vmatpush1.bf16.msra.mxu0 0
  %428 = vmatprep.subr.bf16.mxu0 0
  %429 = vmatpush1.bf16.msra.mxu0 0
  %430 = vmatprep.subr.bf16.mxu0 0
  %431 = vmatpush1.bf16.msra.mxu0 0
  %432 = vmatprep.subr.bf16.mxu0 0
  %433 = vmatpush1.bf16.msra.mxu0 0
  %434 = vmatprep.subr.bf16.mxu0 0
  %435 = vmatpush1.bf16.msra.mxu0 %v400
  %436 = vmatprep.subr.bf16.mxu0 0
  %437 = vmatpush1.bf16.msra.mxu0 %v399
  %438 = vmatprep.subr.bf16.mxu0 0
  %439 = vmatpush2.bf16.msra.mxu0 0
  %440 = vmatprep.subr.bf16.mxu0 0
  %441 = vmatpush2.bf16.msra.mxu0 0
  %442 = vmatprep.subr.bf16.mxu0 0
  %443 = vmatpush2.bf16.msra.mxu0 0
  %444 = vmatprep.subr.bf16.mxu0 0
  %445 = vmatpush2.bf16.msra.mxu0 0
  %446 = vmatprep.subr.bf16.mxu0 0
  %447 = vmatpush2.bf16.msra.mxu0 0
  %448 = vmatprep.subr.bf16.mxu0 0
  %449 = vmatpush2.bf16.msra.mxu0 0
  %450 = vmatprep.subr.bf16.mxu0 0
  %451 = vmatpush2.bf16.msra.mxu0 0
  %452 = vmatprep.subr.bf16.mxu0 0
  %453 = vmatpush2.bf16.msra.mxu0 0
  %454 = vmatprep.mubr.bf16.mxu0 0
  %455 = vmatmul.mubr.bf16.gmra.mxu0 %v420
  %v456 = vpop.f32.mrf.mxu0
  %v457 = vadd.f32 %v406, %v456
  %v458 = vpop.f32.mrf.mxu0
  %v459 = vpop.f32.mrf.mxu0
  %v460 = vadd.f32 %v411, %v459
  %v461 = vpop.f32.mrf.mxu0
  %462 = vdwg.mxu0
  %v463 = vmax.f32 %v457, 0.0
  %v464 = vmax.f32 %v460, 0.0
  %v465 = vld [vmem:[%s8] sm:$0xf]
  %v466 = vpack.c.bf16 %v464, %v463
  %v467 = vld [vmem:[%s9] sm:$0xff]
  %469 = vset.pattern.permute.xlu0 0
  %470 = vperm.xlu0 %469, %v467
  %v471 = vpop.permute.xlu0 %470
  %vm473 = vcmask 130048
  %v475 = vsel %vm473, %v465, 0
  %477 = vmatprep.subr.bf16.mxu0 0
  %478 = vmatpush1.bf16.msra.mxu0 0
  %479 = vmatprep.subr.bf16.mxu0 0
  %480 = vmatpush1.bf16.msra.mxu0 0
  %481 = vmatprep.subr.bf16.mxu0 0
  %482 = vmatpush1.bf16.msra.mxu0 0
  %483 = vmatprep.subr.bf16.mxu0 0
  %484 = vmatpush1.bf16.msra.mxu0 0
  %485 = vmatprep.subr.bf16.mxu0 0
  %486 = vmatpush1.bf16.msra.mxu0 0
  %487 = vmatprep.subr.bf16.mxu0 0
  %488 = vmatpush1.bf16.msra.mxu0 0
  %489 = vmatprep.subr.bf16.mxu0 0
  %490 = vmatpush1.bf16.msra.mxu0 0
  %491 = vmatprep.subr.bf16.mxu0 0
  %492 = vmatpush1.bf16.msra.mxu0 %v466
  %493 = vmatprep.subr.bf16.mxu0 0
  %494 = vmatpush2.bf16.msra.mxu0 0
  %495 = vmatprep.subr.bf16.mxu0 0
  %496 = vmatpush2.bf16.msra.mxu0 0
  %497 = vmatprep.subr.bf16.mxu0 0
  %498 = vmatpush2.bf16.msra.mxu0 0
  %499 = vmatprep.subr.bf16.mxu0 0
  %500 = vmatpush2.bf16.msra.mxu0 0
  %501 = vmatprep.subr.bf16.mxu0 0
  %502 = vmatpush2.bf16.msra.mxu0 0
  %503 = vmatprep.subr.bf16.mxu0 0
  %504 = vmatpush2.bf16.msra.mxu0 0
  %505 = vmatprep.subr.bf16.mxu0 0
  %506 = vmatpush2.bf16.msra.mxu0 0
  %507 = vmatprep.subr.bf16.mxu0 0
  %508 = vmatpush2.bf16.msra.mxu0 0
  %509 = vmatprep.mubr.bf16.mxu0 0
  %510 = vmatmul.mubr.bf16.gmra.mxu0 %v475
  %v511 = vpop.f32.mrf.mxu0
  %v512 = vadd.f32 %v471, %v511
  %v513 = vpop.f32.mrf.mxu0
  %v514 = vpop.f32.mrf.mxu0
  %v515 = vpop.f32.mrf.mxu0
  %516 = vdwg.mxu0
  %v517 = vmax.f32 %v512, 0.0
  %v518 = vld [vmem:[%s10] sm:$0x1]
  %v519 = vpack.c.bf16 %v517, %v517
  %v520 = vld [vmem:[#allocation2] sm:$0x1]
  %522 = vset.pattern.permute.xlu0 0
  %523 = vperm.xlu0 %522, %v520
  %v524 = vpop.permute.xlu0 %523
  %v526 = vlaneseq
  %v527 = vshrl.u32 %v526, 7
  %v528 = vsub.s32 0, %v527
  %v529 = vrot.slane %v524, %v528
  %vm530 = vcmask 64512
  %v532 = vsel %vm530, %v518, 0
  %vm534 = vcmask 1043456
  %v536 = vsel %vm534, %v519, 0
  %538 = vmatprep.subr.bf16.mxu0 0
  %539 = vmatpush1.bf16.msra.mxu0 0
  %540 = vmatprep.subr.bf16.mxu0 0
  %541 = vmatpush1.bf16.msra.mxu0 0
  %542 = vmatprep.subr.bf16.mxu0 0
  %543 = vmatpush1.bf16.msra.mxu0 0
  %544 = vmatprep.subr.bf16.mxu0 0
  %545 = vmatpush1.bf16.msra.mxu0 0
  %546 = vmatprep.subr.bf16.mxu0 0
  %547 = vmatpush1.bf16.msra.mxu0 0
  %548 = vmatprep.subr.bf16.mxu0 0
  %549 = vmatpush1.bf16.msra.mxu0 0
  %550 = vmatprep.subr.bf16.mxu0 0
  %551 = vmatpush1.bf16.msra.mxu0 0
  %552 = vmatprep.subr.bf16.mxu0 0
  %553 = vmatpush1.bf16.msra.mxu0 %v536
  %554 = vmatprep.subr.bf16.mxu0 0
  %555 = vmatpush2.bf16.msra.mxu0 0
  %556 = vmatprep.subr.bf16.mxu0 0
  %557 = vmatpush2.bf16.msra.mxu0 0
  %558 = vmatprep.subr.bf16.mxu0 0
  %559 = vmatpush2.bf16.msra.mxu0 0
  %560 = vmatprep.subr.bf16.mxu0 0
  %561 = vmatpush2.bf16.msra.mxu0 0
  %562 = vmatprep.subr.bf16.mxu0 0
  %563 = vmatpush2.bf16.msra.mxu0 0
  %564 = vmatprep.subr.bf16.mxu0 0
  %565 = vmatpush2.bf16.msra.mxu0 0
  %566 = vmatprep.subr.bf16.mxu0 0
  %567 = vmatpush2.bf16.msra.mxu0 0
  %568 = vmatprep.subr.bf16.mxu0 0
  %569 = vmatpush2.bf16.msra.mxu0 0
  %570 = vmatprep.mubr.bf16.mxu0 0
  %571 = vmatmul.mubr.bf16.gmra.mxu0 %v532
  %v572 = vpop.f32.mrf.mxu0
  %v573 = vadd.f32 %v529, %v572
  %v574 = vpop.f32.mrf.mxu0
  %v575 = vpop.f32.mrf.mxu0
  %v576 = vpop.f32.mrf.mxu0
  %577 = vdwg.mxu0
  %v578 = vxor.u32 %v573, 2147483648
  %v579 = vmul.f32 %v578, 1.442695
  %v580 = vpow.pop %v579
  %v581 = vadd.f32 %v580, 1.0
  %v582 = vrcp.pop %v581
  %v583 = vmul.f32 1.0, %v582
  %584 = vst [vmem:[%s12] sm:$0x1] %v583
  // Predicated region
  $region50: #{ncf_forward.1} parent=0 // pred_check
    _
  $region51: #{ncf_forward.1} parent=0 // pred_check_branch
    %586 = sbr.rel (0) target = $region53
  $region52: #{ncf_forward.1} parent=0 // pred_region
    _
  $region53: #{ncf_forward.1} parent=0 // pred_fallthru
    _
  // Predicated region
  $region54: #{ncf_forward.1} parent=0 // pred_check
    _
  $region55: #{ncf_forward.1} parent=0 // pred_check_branch
    %588 = sbr.rel (0) target = $region57
  $region56: #{ncf_forward.1} parent=0 // pred_region
    _
  $region57: #{ncf_forward.1} parent=0 // pred_fallthru
    _

// kernel: ncf_forward.1
$region0: #{ncf_forward.1}
  #allocation0 [shape = 'u32[]', space=smem, size = 0x4, offset = 0x4, fixed_abs, tag = 'smem constant byte address 0x4 - core index']
  #allocation1 [shape = 'u32[144,128]{1,0:T(1,128)}', space=vmem, size = 0x12000, scoped, tag = 'internal scratch']
  #allocation2 [shape = 'f32[1,1]{1,0:T(1,128)S(1)}', space=vmem, size = 0x200, scoped, tag = 'scoped memory for ncf_forward.1']
  %s0 = inlined_call_operand.vmem [shape: s32[1,128], index: 0, kind: input, shape index: {}]
  %s1 = inlined_call_operand.vmem [shape: s32[1,128], index: 1, kind: input, shape index: {}]
  %s2 = inlined_call_operand.vmem [shape: bf16[64,96], index: 2, kind: input, shape index: {}]
  %s3 = inlined_call_operand.vmem [shape: f32[64,1], index: 3, kind: input, shape index: {}]
  %s4 = inlined_call_operand.vmem [shape: bf16[32,64], index: 4, kind: input, shape index: {}]
  %s5 = inlined_call_operand.vmem [shape: f32[32,1], index: 5, kind: input, shape index: {}]
  %s6 = inlined_call_operand.vmem [shape: bf16[16,32], index: 6, kind: input, shape index: {}]
  %s7 = inlined_call_operand.vmem [shape: f32[16,1], index: 7, kind: input, shape index: {}]
  %s8 = inlined_call_operand.vmem [shape: bf16[8,16], index: 8, kind: input, shape index: {}]
  %s9 = inlined_call_operand.vmem [shape: f32[8,1], index: 9, kind: input, shape index: {}]
  %s10 = inlined_call_operand.vmem [shape: bf16[1,8], index: 10, kind: input, shape index: {}]
  %s11 = inlined_call_operand.<no memory space> [shape: f32[1,1], index: 11, kind: input, shape index: {}]
  %s12 = inlined_call_operand.vmem [shape: f32[1,128], index: 12, kind: output, shape index: {}]
  %s13 = sld [smem:[#allocation0]]
  $region58: #{ncf_forward.1} parent=0
    _
  %s15 = ssub.s32 1, %s13
  %s16 = scalar_select 0, %s15, %s13
  %v17 = vstv %s11
  %18 = vst [vmem:[#allocation2] sm:$0x1] %v17
  // Predicated region
  $region2: #{ncf_forward.1} parent=0 // pred_check
    _
  $region3: #{ncf_forward.1} parent=0 // pred_check_branch
    %20 = sbr.rel (0) target = $region5
  $region4: #{ncf_forward.1} parent=0 // pred_region
    _
  $region5: #{ncf_forward.1} parent=0 // pred_fallthru
    _
  // Predicated region
  $region6: #{ncf_forward.1} parent=0 // pred_check
    _
  $region7: #{ncf_forward.1} parent=0 // pred_check_branch
    %22 = sbr.rel (0) target = $region9
  $region8: #{ncf_forward.1} parent=0 // pred_region
    _
  $region9: #{ncf_forward.1} parent=0 // pred_fallthru
    _
  // Predicated region
  $region10: #{ncf_forward.1} parent=0 // pred_check
    _
  $region11: #{ncf_forward.1} parent=0 // pred_check_branch
    %24 = sbr.rel (0) target = $region13
  $region12: #{ncf_forward.1} parent=0 // pred_region
    _
  $region13: #{ncf_forward.1} parent=0 // pred_fallthru
    _
  // Predicated region
  $region14: #{ncf_forward.1} parent=0 // pred_check
    _
  $region15: #{ncf_forward.1} parent=0 // pred_check_branch
    %26 = sbr.rel (0) target = $region17
  $region16: #{ncf_forward.1} parent=0 // pred_region
    _
  $region17: #{ncf_forward.1} parent=0 // pred_fallthru
    _
  // Predicated region
  $region18: #{ncf_forward.1} parent=0 // pred_check
    _
  $region19: #{ncf_forward.1} parent=0 // pred_check_branch
    %28 = sbr.rel (0) target = $region21
  $region20: #{ncf_forward.1} parent=0 // pred_region
    _
  $region21: #{ncf_forward.1} parent=0 // pred_fallthru
    _
  // Predicated region
  $region22: #{ncf_forward.1} parent=0 // pred_check
    _
  $region23: #{ncf_forward.1} parent=0 // pred_check_branch
    %30 = sbr.rel (0) target = $region25
  $region24: #{ncf_forward.1} parent=0 // pred_region
    _
  $region25: #{ncf_forward.1} parent=0 // pred_fallthru
    _
  // Predicated region
  $region26: #{ncf_forward.1} parent=0 // pred_check
    _
  $region27: #{ncf_forward.1} parent=0 // pred_check_branch
    %32 = sbr.rel (0) target = $region29
  $region28: #{ncf_forward.1} parent=0 // pred_region
    _
  $region29: #{ncf_forward.1} parent=0 // pred_fallthru
    _
  // Predicated region
  $region30: #{ncf_forward.1} parent=0 // pred_check
    _
  $region31: #{ncf_forward.1} parent=0 // pred_check_branch
    %34 = sbr.rel (0) target = $region33
  $region32: #{ncf_forward.1} parent=0 // pred_region
    _
  $region33: #{ncf_forward.1} parent=0 // pred_fallthru
    _
  // Predicated region
  $region34: #{ncf_forward.1} parent=0 // pred_check
    _
  $region35: #{ncf_forward.1} parent=0 // pred_check_branch
    %36 = sbr.rel (0) target = $region37
  $region36: #{ncf_forward.1} parent=0 // pred_region
    _
  $region37: #{ncf_forward.1} parent=0 // pred_fallthru
    _
  // Predicated region
  $region38: #{ncf_forward.1} parent=0 // pred_check
    _
  $region39: #{ncf_forward.1} parent=0 // pred_check_branch
    %38 = sbr.rel (0) target = $region41
  $region40: #{ncf_forward.1} parent=0 // pred_region
    _
  $region41: #{ncf_forward.1} parent=0 // pred_fallthru
    _
  // Predicated region
  $region42: #{ncf_forward.1} parent=0 // pred_check
    _
  $region43: #{ncf_forward.1} parent=0 // pred_check_branch
    %40 = sbr.rel (0) target = $region45
  $region44: #{ncf_forward.1} parent=0 // pred_region
    _
  $region45: #{ncf_forward.1} parent=0 // pred_fallthru
    _
  // Predicated region
  $region46: #{ncf_forward.1} parent=0 // pred_check
    _
  $region47: #{ncf_forward.1} parent=0 // pred_check_branch
    %42 = sbr.rel (0) target = $region49
  $region48: #{ncf_forward.1} parent=0 // pred_region
    _
  $region49: #{ncf_forward.1} parent=0 // pred_fallthru
    _
  %v44 = vld [vmem:[%s0] sm:$0x1]
  %v45 = vld [vmem:[%s1] sm:$0x1]
  %v46 = vlaneseq
  %v47 = vshrl.u32 %v46, 7
  %v48 = vadd.s32 %v47, 8
  %v49 = vadd.s32 %v47, 16
  %v50 = vadd.s32 %v47, 24
  %v51 = vadd.s32 %v47, 32
  %v52 = vadd.s32 %v47, 40
  %v53 = vadd.s32 %v47, 48
  %v54 = vadd.s32 %v47, 56
  %v55 = vadd.s32 %v47, 64
  %v56 = vadd.s32 %v47, 72
  %v57 = vadd.s32 %v47, 80
  %v58 = vadd.s32 %v47, 88
  %v59 = vlaneseq
  %v60 = vshrl.u32 %v59, 7
  %v61 = vsub.s32 0, %v60
  %v62 = vrot.slane %v44, %v61
  %vm63 = vcmp.eq.s32.totalorder %v47, %v62
  %vm64 = vcmp.eq.s32.totalorder %v48, %v62
  %vm65 = vcmp.eq.s32.totalorder %v49, %v62
  %vm66 = vcmp.eq.s32.totalorder %v50, %v62
  %vm67 = vcmp.eq.s32.totalorder %v51, %v62
  %vm68 = vcmp.eq.s32.totalorder %v52, %v62
  %vm69 = vcmp.eq.s32.totalorder %v53, %v62
  %vm70 = vcmp.eq.s32.totalorder %v54, %v62
  %vm71 = vcmp.eq.s32.totalorder %v55, %v62
  %vm72 = vcmp.eq.s32.totalorder %v56, %v62
  %vm73 = vcmp.eq.s32.totalorder %v57, %v62
  %vm74 = vcmp.eq.s32.totalorder %v58, %v62
  %v75 = vlaneseq
  %v76 = vshrl.u32 %v75, 7
  %v77 = vsub.s32 0, %v76
  %v78 = vrot.slane %v45, %v77
  %vm79 = vcmp.eq.s32.totalorder %v47, %v78
  %vm80 = vcmp.eq.s32.totalorder %v48, %v78
  %vm81 = vcmp.eq.s32.totalorder %v49, %v78
  %vm82 = vcmp.eq.s32.totalorder %v50, %v78
  %vm83 = vcmp.eq.s32.totalorder %v51, %v78
  %vm84 = vcmp.eq.s32.totalorder %v52, %v78
  %vm85 = vcmp.eq.s32.totalorder %v53, %v78
  %vm86 = vcmp.eq.s32.totalorder %v54, %v78
  %vm87 = vcmp.eq.s32.totalorder %v55, %v78
  %vm88 = vcmp.eq.s32.totalorder %v56, %v78
  %vm89 = vcmp.eq.s32.totalorder %v57, %v78
  %vm90 = vcmp.eq.s32.totalorder %v58, %v78
  %vm91 = vmor %vm63, %vm79
  %vm92 = vmor %vm64, %vm80
  %vm93 = vmor %vm65, %vm81
  %vm94 = vmor %vm66, %vm82
  %vm95 = vmor %vm67, %vm83
  %vm96 = vmor %vm68, %vm84
  %vm97 = vmor %vm69, %vm85
  %vm98 = vmor %vm70, %vm86
  %vm99 = vmor %vm71, %vm87
  %vm100 = vmor %vm72, %vm88
  %vm101 = vmor %vm73, %vm89
  %vm102 = vmor %vm74, %vm90
  %v103 = vsel %vm91, 1, 0
  %v104 = vsel %vm92, 1, 0
  %v105 = vsel %vm93, 1, 0
  %v106 = vsel %vm94, 1, 0
  %v107 = vsel %vm95, 1, 0
  %v108 = vsel %vm96, 1, 0
  %v109 = vsel %vm97, 1, 0
  %v110 = vsel %vm98, 1, 0
  %v111 = vsel %vm99, 1, 0
  %v112 = vsel %vm100, 1, 0
  %v113 = vsel %vm101, 1, 0
  %v114 = vsel %vm102, 1, 0
  %v115 = vcvt.s32.f32 %v103
  %v116 = vcvt.s32.f32 %v104
  %v117 = vcvt.s32.f32 %v105
  %v118 = vcvt.s32.f32 %v106
  %v119 = vcvt.s32.f32 %v107
  %v120 = vcvt.s32.f32 %v108
  %v121 = vcvt.s32.f32 %v109
  %v122 = vcvt.s32.f32 %v110
  %v123 = vcvt.s32.f32 %v111
  %v124 = vcvt.s32.f32 %v112
  %v125 = vcvt.s32.f32 %v113
  %v126 = vcvt.s32.f32 %v114
  %v127 = vpack.c.bf16 %v116, %v115
  %v128 = vpack.c.bf16 %v118, %v117
  %v129 = vpack.c.bf16 %v120, %v119
  %v130 = vpack.c.bf16 %v122, %v121
  %v131 = vpack.c.bf16 %v124, %v123
  %v132 = vpack.c.bf16 %v126, %v125
  %v133 = vld [vmem:[%s2] sm:$0xf]
  %v134 = vld [vmem:[%s2 + $0x4] sm:$0xf]
  %v135 = vld [vmem:[%s2 + $0x8] sm:$0xf]
  %v136 = vld [vmem:[%s2 + $0xc] sm:$0xf]
  %v137 = vld [vmem:[%s2 + $0x10] sm:$0xf]
  %v138 = vld [vmem:[%s2 + $0x14] sm:$0xf]
  %v139 = vld [vmem:[%s2 + $0x18] sm:$0xf]
  %v140 = vld [vmem:[%s2 + $0x1c] sm:$0xf]
  %v141 = vld [vmem:[%s3] sm:$0xff]
  %v142 = vld [vmem:[%s3 + $0x8] sm:$0xff]
  %v143 = vld [vmem:[%s3 + $0x10] sm:$0xff]
  %v144 = vld [vmem:[%s3 + $0x18] sm:$0xff]
  %v145 = vld [vmem:[%s3 + $0x20] sm:$0xff]
  %v146 = vld [vmem:[%s3 + $0x28] sm:$0xff]
  %v147 = vld [vmem:[%s3 + $0x30] sm:$0xff]
  %v148 = vld [vmem:[%s3 + $0x38] sm:$0xff]
  %150 = vset.pattern.permute.xlu0 0
  %151 = vperm.xlu0 %150, %v141
  %v152 = vpop.permute.xlu0 %151
  %155 = vset.pattern.permute.xlu0 0
  %156 = vperm.xlu0 %155, %v142
  %v157 = vpop.permute.xlu0 %156
  %160 = vset.pattern.permute.xlu0 0
  %161 = vperm.xlu0 %160, %v143
  %v162 = vpop.permute.xlu0 %161
  %165 = vset.pattern.permute.xlu0 0
  %166 = vperm.xlu0 %165, %v144
  %v167 = vpop.permute.xlu0 %166
  %170 = vset.pattern.permute.xlu0 0
  %171 = vperm.xlu0 %170, %v145
  %v172 = vpop.permute.xlu0 %171
  %175 = vset.pattern.permute.xlu0 0
  %176 = vperm.xlu0 %175, %v146
  %v177 = vpop.permute.xlu0 %176
  %180 = vset.pattern.permute.xlu0 0
  %181 = vperm.xlu0 %180, %v147
  %v182 = vpop.permute.xlu0 %181
  %185 = vset.pattern.permute.xlu0 0
  %186 = vperm.xlu0 %185, %v148
  %v187 = vpop.permute.xlu0 %186
  %v197 = vunpack.c.l.b16 %v133
  %v198 = vunpack.c.l.b16 %v134
  %v199 = vunpack.c.l.b16 %v135
  %v200 = vunpack.c.l.b16 %v136
  %v201 = vunpack.c.l.b16 %v137
  %v202 = vunpack.c.l.b16 %v138
  %v203 = vunpack.c.l.b16 %v139
  %v204 = vunpack.c.l.b16 %v140
  %v205 = vpack.c.b16 %v198, %v197
  %v206 = vpack.c.b16 %v200, %v199
  %v207 = vpack.c.b16 %v202, %v201
  %v208 = vpack.c.b16 %v204, %v203
  %vm209 = vcmask 785408
  %v211 = vsel %vm209, %v205, 0
  %v214 = vsel %vm209, %v206, 0
  %v217 = vsel %vm209, %v207, 0
  %v220 = vsel %vm209, %v208, 0
  %222 = vmatprep.subr.bf16.mxu0 0
  %223 = vmatpush1.bf16.msra.mxu0 0
  %224 = vmatprep.subr.bf16.mxu0 0
  %225 = vmatpush1.bf16.msra.mxu0 0
  %226 = vmatprep.subr.bf16.mxu0 0
  %227 = vmatpush1.bf16.msra.mxu0 %v132
  %228 = vmatprep.subr.bf16.mxu0 0
  %229 = vmatpush1.bf16.msra.mxu0 %v131
  %230 = vmatprep.subr.bf16.mxu0 0
  %231 = vmatpush1.bf16.msra.mxu0 %v130
  %232 = vmatprep.subr.bf16.mxu0 0
  %233 = vmatpush1.bf16.msra.mxu0 %v129
  %234 = vmatprep.subr.bf16.mxu0 0
  %235 = vmatpush1.bf16.msra.mxu0 %v128
  %236 = vmatprep.subr.bf16.mxu0 0
  %237 = vmatpush1.bf16.msra.mxu0 %v127
  %238 = vmatprep.subr.bf16.mxu0 0
  %239 = vmatpush2.bf16.msra.mxu0 0
  %240 = vmatprep.subr.bf16.mxu0 0
  %241 = vmatpush2.bf16.msra.mxu0 0
  %242 = vmatprep.subr.bf16.mxu0 0
  %243 = vmatpush2.bf16.msra.mxu0 0
  %244 = vmatprep.subr.bf16.mxu0 0
  %245 = vmatpush2.bf16.msra.mxu0 0
  %246 = vmatprep.subr.bf16.mxu0 0
  %247 = vmatpush2.bf16.msra.mxu0 0
  %248 = vmatprep.subr.bf16.mxu0 0
  %249 = vmatpush2.bf16.msra.mxu0 0
  %250 = vmatprep.subr.bf16.mxu0 0
  %251 = vmatpush2.bf16.msra.mxu0 0
  %252 = vmatprep.subr.bf16.mxu0 0
  %253 = vmatpush2.bf16.msra.mxu0 0
  %254 = vmatprep.mubr.bf16.mxu0 0
  %255 = vmatmul.mubr.bf16.gmra.mxu0 %v211
  %v256 = vpop.f32.mrf.mxu0
  %v257 = vadd.f32 %v152, %v256
  %v258 = vpop.f32.mrf.mxu0
  %v259 = vpop.f32.mrf.mxu0
  %v260 = vadd.f32 %v157, %v259
  %v261 = vpop.f32.mrf.mxu0
  %262 = vmatprep.mubr.bf16.mxu0 0
  %263 = vmatmul.mubr.bf16.gmra.mxu0 %v214
  %v264 = vpop.f32.mrf.mxu0
  %v265 = vadd.f32 %v162, %v264
  %v266 = vpop.f32.mrf.mxu0
  %v267 = vpop.f32.mrf.mxu0
  %v268 = vadd.f32 %v167, %v267
  %v269 = vpop.f32.mrf.mxu0
  %270 = vmatprep.mubr.bf16.mxu0 0
  %271 = vmatmul.mubr.bf16.gmra.mxu0 %v217
  %v272 = vpop.f32.mrf.mxu0
  %v273 = vadd.f32 %v172, %v272
  %v274 = vpop.f32.mrf.mxu0
  %v275 = vpop.f32.mrf.mxu0
  %v276 = vadd.f32 %v177, %v275
  %v277 = vpop.f32.mrf.mxu0
  %278 = vmatprep.mubr.bf16.mxu0 0
  %279 = vmatmul.mubr.bf16.gmra.mxu0 %v220
  %v280 = vpop.f32.mrf.mxu0
  %v281 = vadd.f32 %v182, %v280
  %v282 = vpop.f32.mrf.mxu0
  %v283 = vpop.f32.mrf.mxu0
  %v284 = vadd.f32 %v187, %v283
  %v285 = vpop.f32.mrf.mxu0
  %286 = vdwg.mxu0
  %v287 = vmax.f32 %v257, 0.0
  %v288 = vmax.f32 %v260, 0.0
  %v289 = vmax.f32 %v265, 0.0
  %v290 = vmax.f32 %v268, 0.0
  %v291 = vmax.f32 %v273, 0.0
  %v292 = vmax.f32 %v276, 0.0
  %v293 = vmax.f32 %v281, 0.0
  %v294 = vmax.f32 %v284, 0.0
  %v295 = vld [vmem:[%s4] sm:$0xf]
  %v296 = vld [vmem:[%s4 + $0x4] sm:$0xf]
  %v297 = vld [vmem:[%s4 + $0x8] sm:$0xf]
  %v298 = vld [vmem:[%s4 + $0xc] sm:$0xf]
  %v299 = vpack.c.bf16 %v288, %v287
  %v300 = vpack.c.bf16 %v290, %v289
  %v301 = vpack.c.bf16 %v292, %v291
  %v302 = vpack.c.bf16 %v294, %v293
  %v303 = vld [vmem:[%s5] sm:$0xff]
  %v304 = vld [vmem:[%s5 + $0x8] sm:$0xff]
  %v305 = vld [vmem:[%s5 + $0x10] sm:$0xff]
  %v306 = vld [vmem:[%s5 + $0x18] sm:$0xff]
  %308 = vset.pattern.permute.xlu0 0
  %309 = vperm.xlu0 %308, %v303
  %v310 = vpop.permute.xlu0 %309
  %313 = vset.pattern.permute.xlu0 0
  %314 = vperm.xlu0 %313, %v304
  %v315 = vpop.permute.xlu0 %314
  %318 = vset.pattern.permute.xlu0 0
  %319 = vperm.xlu0 %318, %v305
  %v320 = vpop.permute.xlu0 %319
  %323 = vset.pattern.permute.xlu0 0
  %324 = vperm.xlu0 %323, %v306
  %v325 = vpop.permute.xlu0 %324
  %v331 = vunpack.c.l.b16 %v295
  %v332 = vunpack.c.l.b16 %v296
  %v333 = vunpack.c.l.b16 %v297
  %v334 = vunpack.c.l.b16 %v298
  %v335 = vpack.c.b16 %v332, %v331
  %v336 = vpack.c.b16 %v334, %v333
  %vm337 = vcmask 523264
  %v339 = vsel %vm337, %v335, 0
  %v342 = vsel %vm337, %v336, 0
  %344 = vmatprep.subr.bf16.mxu0 0
  %345 = vmatpush1.bf16.msra.mxu0 0
  %346 = vmatprep.subr.bf16.mxu0 0
  %347 = vmatpush1.bf16.msra.mxu0 0
  %348 = vmatprep.subr.bf16.mxu0 0
  %349 = vmatpush1.bf16.msra.mxu0 0
  %350 = vmatprep.subr.bf16.mxu0 0
  %351 = vmatpush1.bf16.msra.mxu0 0
  %352 = vmatprep.subr.bf16.mxu0 0
  %353 = vmatpush1.bf16.msra.mxu0 %v302
  %354 = vmatprep.subr.bf16.mxu0 0
  %355 = vmatpush1.bf16.msra.mxu0 %v301
  %356 = vmatprep.subr.bf16.mxu0 0
  %357 = vmatpush1.bf16.msra.mxu0 %v300
  %358 = vmatprep.subr.bf16.mxu0 0
  %359 = vmatpush1.bf16.msra.mxu0 %v299
  %360 = vmatprep.subr.bf16.mxu0 0
  %361 = vmatpush2.bf16.msra.mxu0 0
  %362 = vmatprep.subr.bf16.mxu0 0
  %363 = vmatpush2.bf16.msra.mxu0 0
  %364 = vmatprep.subr.bf16.mxu0 0
  %365 = vmatpush2.bf16.msra.mxu0 0
  %366 = vmatprep.subr.bf16.mxu0 0
  %367 = vmatpush2.bf16.msra.mxu0 0
  %368 = vmatprep.subr.bf16.mxu0 0
  %369 = vmatpush2.bf16.msra.mxu0 0
  %370 = vmatprep.subr.bf16.mxu0 0
  %371 = vmatpush2.bf16.msra.mxu0 0
  %372 = vmatprep.subr.bf16.mxu0 0
  %373 = vmatpush2.bf16.msra.mxu0 0
  %374 = vmatprep.subr.bf16.mxu0 0
  %375 = vmatpush2.bf16.msra.mxu0 0
  %376 = vmatprep.mubr.bf16.mxu0 0
  %377 = vmatmul.mubr.bf16.gmra.mxu0 %v339
  %v378 = vpop.f32.mrf.mxu0
  %v379 = vadd.f32 %v310, %v378
  %v380 = vpop.f32.mrf.mxu0
  %v381 = vpop.f32.mrf.mxu0
  %v382 = vadd.f32 %v315, %v381
  %v383 = vpop.f32.mrf.mxu0
  %384 = vmatprep.mubr.bf16.mxu0 0
  %385 = vmatmul.mubr.bf16.gmra.mxu0 %v342
  %v386 = vpop.f32.mrf.mxu0
  %v387 = vadd.f32 %v320, %v386
  %v388 = vpop.f32.mrf.mxu0
  %v389 = vpop.f32.mrf.mxu0
  %v390 = vadd.f32 %v325, %v389
  %v391 = vpop.f32.mrf.mxu0
  %392 = vdwg.mxu0
  %v393 = vmax.f32 %v379, 0.0
  %v394 = vmax.f32 %v382, 0.0
  %v395 = vmax.f32 %v387, 0.0
  %v396 = vmax.f32 %v390, 0.0
  %v397 = vld [vmem:[%s6] sm:$0xf]
  %v398 = vld [vmem:[%s6 + $0x4] sm:$0xf]
  %v399 = vpack.c.bf16 %v394, %v393
  %v400 = vpack.c.bf16 %v396, %v395
  %v401 = vld [vmem:[%s7] sm:$0xff]
  %v402 = vld [vmem:[%s7 + $0x8] sm:$0xff]
  %404 = vset.pattern.permute.xlu0 0
  %405 = vperm.xlu0 %404, %v401
  %v406 = vpop.permute.xlu0 %405
  %409 = vset.pattern.permute.xlu0 0
  %410 = vperm.xlu0 %409, %v402
  %v411 = vpop.permute.xlu0 %410
  %v415 = vunpack.c.l.b16 %v397
  %v416 = vunpack.c.l.b16 %v398
  %v417 = vpack.c.b16 %v416, %v415
  %vm418 = vcmask 261120
  %v420 = vsel %vm418, %v417, 0
  %422 = vmatprep.subr.bf16.mxu0 0
  %423 = vmatpush1.bf16.msra.mxu0 0
  %424 = vmatprep.subr.bf16.mxu0 0
  %425 = vmatpush1.bf16.msra.mxu0 0
  %426 = vmatprep.subr.bf16.mxu0 0
  %427 = vmatpush1.bf16.msra.mxu0 0
  %428 = vmatprep.subr.bf16.mxu0 0
  %429 = vmatpush1.bf16.msra.mxu0 0
  %430 = vmatprep.subr.bf16.mxu0 0
  %431 = vmatpush1.bf16.msra.mxu0 0
  %432 = vmatprep.subr.bf16.mxu0 0
  %433 = vmatpush1.bf16.msra.mxu0 0
  %434 = vmatprep.subr.bf16.mxu0 0
  %435 = vmatpush1.bf16.msra.mxu0 %v400
  %436 = vmatprep.subr.bf16.mxu0 0
  %437 = vmatpush1.bf16.msra.mxu0 %v399
  %438 = vmatprep.subr.bf16.mxu0 0
  %439 = vmatpush2.bf16.msra.mxu0 0
  %440 = vmatprep.subr.bf16.mxu0 0
  %441 = vmatpush2.bf16.msra.mxu0 0
  %442 = vmatprep.subr.bf16.mxu0 0
  %443 = vmatpush2.bf16.msra.mxu0 0
  %444 = vmatprep.subr.bf16.mxu0 0
  %445 = vmatpush2.bf16.msra.mxu0 0
  %446 = vmatprep.subr.bf16.mxu0 0
  %447 = vmatpush2.bf16.msra.mxu0 0
  %448 = vmatprep.subr.bf16.mxu0 0
  %449 = vmatpush2.bf16.msra.mxu0 0
  %450 = vmatprep.subr.bf16.mxu0 0
  %451 = vmatpush2.bf16.msra.mxu0 0
  %452 = vmatprep.subr.bf16.mxu0 0
  %453 = vmatpush2.bf16.msra.mxu0 0
  %454 = vmatprep.mubr.bf16.mxu0 0
  %455 = vmatmul.mubr.bf16.gmra.mxu0 %v420
  %v456 = vpop.f32.mrf.mxu0
  %v457 = vadd.f32 %v406, %v456
  %v458 = vpop.f32.mrf.mxu0
  %v459 = vpop.f32.mrf.mxu0
  %v460 = vadd.f32 %v411, %v459
  %v461 = vpop.f32.mrf.mxu0
  %462 = vdwg.mxu0
  %v463 = vmax.f32 %v457, 0.0
  %v464 = vmax.f32 %v460, 0.0
  %v465 = vld [vmem:[%s8] sm:$0xf]
  %v466 = vpack.c.bf16 %v464, %v463
  %v467 = vld [vmem:[%s9] sm:$0xff]
  %469 = vset.pattern.permute.xlu0 0
  %470 = vperm.xlu0 %469, %v467
  %v471 = vpop.permute.xlu0 %470
  %vm473 = vcmask 130048
  %v475 = vsel %vm473, %v465, 0
  %477 = vmatprep.subr.bf16.mxu0 0
  %478 = vmatpush1.bf16.msra.mxu0 0
  %479 = vmatprep.subr.bf16.mxu0 0
  %480 = vmatpush1.bf16.msra.mxu0 0
  %481 = vmatprep.subr.bf16.mxu0 0
  %482 = vmatpush1.bf16.msra.mxu0 0
  %483 = vmatprep.subr.bf16.mxu0 0
  %484 = vmatpush1.bf16.msra.mxu0 0
  %485 = vmatprep.subr.bf16.mxu0 0
  %486 = vmatpush1.bf16.msra.mxu0 0
  %487 = vmatprep.subr.bf16.mxu0 0
  %488 = vmatpush1.bf16.msra.mxu0 0
  %489 = vmatprep.subr.bf16.mxu0 0
  %490 = vmatpush1.bf16.msra.mxu0 0
  %491 = vmatprep.subr.bf16.mxu0 0
  %492 = vmatpush1.bf16.msra.mxu0 %v466
  %493 = vmatprep.subr.bf16.mxu0 0
  %494 = vmatpush2.bf16.msra.mxu0 0
  %495 = vmatprep.subr.bf16.mxu0 0
  %496 = vmatpush2.bf16.msra.mxu0 0
  %497 = vmatprep.subr.bf16.mxu0 0
  %498 = vmatpush2.bf16.msra.mxu0 0
  %499 = vmatprep.subr.bf16.mxu0 0
  %500 = vmatpush2.bf16.msra.mxu0 0
  %501 = vmatprep.subr.bf16.mxu0 0
  %502 = vmatpush2.bf16.msra.mxu0 0
  %503 = vmatprep.subr.bf16.mxu0 0
  %504 = vmatpush2.bf16.msra.mxu0 0
  %505 = vmatprep.subr.bf16.mxu0 0
  %506 = vmatpush2.bf16.msra.mxu0 0
  %507 = vmatprep.subr.bf16.mxu0 0
  %508 = vmatpush2.bf16.msra.mxu0 0
  %509 = vmatprep.mubr.bf16.mxu0 0
  %510 = vmatmul.mubr.bf16.gmra.mxu0 %v475
  %v511 = vpop.f32.mrf.mxu0
  %v512 = vadd.f32 %v471, %v511
  %v513 = vpop.f32.mrf.mxu0
  %v514 = vpop.f32.mrf.mxu0
  %v515 = vpop.f32.mrf.mxu0
  %516 = vdwg.mxu0
  %v517 = vmax.f32 %v512, 0.0
  %v518 = vld [vmem:[%s10] sm:$0x1]
  %v519 = vpack.c.bf16 %v517, %v517
  %v520 = vld [vmem:[#allocation2] sm:$0x1]
  %522 = vset.pattern.permute.xlu0 0
  %523 = vperm.xlu0 %522, %v520
  %v524 = vpop.permute.xlu0 %523
  %v526 = vlaneseq
  %v527 = vshrl.u32 %v526, 7
  %v528 = vsub.s32 0, %v527
  %v529 = vrot.slane %v524, %v528
  %vm530 = vcmask 64512
  %v532 = vsel %vm530, %v518, 0
  %vm534 = vcmask 1043456
  %v536 = vsel %vm534, %v519, 0
  %538 = vmatprep.subr.bf16.mxu0 0
  %539 = vmatpush1.bf16.msra.mxu0 0
  %540 = vmatprep.subr.bf16.mxu0 0
  %541 = vmatpush1.bf16.msra.mxu0 0
  %542 = vmatprep.subr.bf16.mxu0 0
  %543 = vmatpush1.bf16.msra.mxu0 0
  %544 = vmatprep.subr.bf16.mxu0 0
  %545 = vmatpush1.bf16.msra.mxu0 0
  %546 = vmatprep.subr.bf16.mxu0 0
  %547 = vmatpush1.bf16.msra.mxu0 0
  %548 = vmatprep.subr.bf16.mxu0 0
  %549 = vmatpush1.bf16.msra.mxu0 0
  %550 = vmatprep.subr.bf16.mxu0 0
  %551 = vmatpush1.bf16.msra.mxu0 0
  %552 = vmatprep.subr.bf16.mxu0 0
  %553 = vmatpush1.bf16.msra.mxu0 %v536
  %554 = vmatprep.subr.bf16.mxu0 0
  %555 = vmatpush2.bf16.msra.mxu0 0
  %556 = vmatprep.subr.bf16.mxu0 0
  %557 = vmatpush2.bf16.msra.mxu0 0
  %558 = vmatprep.subr.bf16.mxu0 0
  %559 = vmatpush2.bf16.msra.mxu0 0
  %560 = vmatprep.subr.bf16.mxu0 0
  %561 = vmatpush2.bf16.msra.mxu0 0
  %562 = vmatprep.subr.bf16.mxu0 0
  %563 = vmatpush2.bf16.msra.mxu0 0
  %564 = vmatprep.subr.bf16.mxu0 0
  %565 = vmatpush2.bf16.msra.mxu0 0
  %566 = vmatprep.subr.bf16.mxu0 0
  %567 = vmatpush2.bf16.msra.mxu0 0
  %568 = vmatprep.subr.bf16.mxu0 0
  %569 = vmatpush2.bf16.msra.mxu0 0
  %570 = vmatprep.mubr.bf16.mxu0 0
  %571 = vmatmul.mubr.bf16.gmra.mxu0 %v532
  %v572 = vpop.f32.mrf.mxu0
  %v573 = vadd.f32 %v529, %v572
  %v574 = vpop.f32.mrf.mxu0
  %v575 = vpop.f32.mrf.mxu0
  %v576 = vpop.f32.mrf.mxu0
  %577 = vdwg.mxu0
  %v578 = vxor.u32 %v573, 2147483648
  %v579 = vmul.f32 %v578, 1.442695
  %v580 = vpow.pop %v579
  %v581 = vadd.f32 %v580, 1.0
  %v582 = vrcp.pop %v581
  %v583 = vmul.f32 1.0, %v582
  %584 = vst [vmem:[%s12] sm:$0x1] %v583
  // Predicated region
  $region50: #{ncf_forward.1} parent=0 // pred_check
    _
  $region51: #{ncf_forward.1} parent=0 // pred_check_branch
    %586 = sbr.rel (0) target = $region53
  $region52: #{ncf_forward.1} parent=0 // pred_region
    _
  $region53: #{ncf_forward.1} parent=0 // pred_fallthru
    _
  // Predicated region
  $region54: #{ncf_forward.1} parent=0 // pred_check
    _
  $region55: #{ncf_forward.1} parent=0 // pred_check_branch
    %588 = sbr.rel (0) target = $region57
  $region56: #{ncf_forward.1} parent=0 // pred_region
    _
  $region57: #{ncf_forward.1} parent=0 // pred_fallthru
    _

</llo_original>
